<compile_context>
chip_gen: v7x
topology: tpu7x:2x2x1
jax: 0.10.0
libtpu: 0.0.40
codegen_flags: <defaults>
</compile_context>

<pallas_src>
import functools

import jax
import jax.numpy as jnp
from jax.experimental import pallas as pl
from jax.experimental.pallas import tpu as pltpu


# ----------------------------- helpers ------------------------------------- #

def _round_up(n, m):
    return ((n + m - 1) // m) * m


def _pad2(a, shape):
    return jnp.pad(a, [(0, s - d) for d, s in zip(a.shape, shape)])


def _pick_tile(n, cands=(512, 256, 128)):
    for c in cands:
        if n >= c and n % c == 0:
            return c
    return n  # small: single full-extent tile


# ----------------------------- kernels -------------------------------------- #

def _linear_kernel(x_ref, w_ref, b_ref, o_ref):
    """Row-tiled fused transform: o = x @ [W_l | W_r] + [0 | b]."""
    o = jnp.dot(x_ref[...].astype(jnp.float32), w_ref[...],
                preferred_element_type=jnp.float32) + b_ref[...]
    o_ref[...] = o.astype(o_ref.dtype)


def _make_agg_kernel(epilogue, valid_cols):
    """Mean-aggregation + epilogue, tiled over (row tile i, adj-column tile k).

    refs: adj (TM,TK) bf16, xl_k (TK,Cp) bf16, xr_i (TM,Cp) bf16,
          inv_deg (TM,1) f32 -> out (TM,Cp)
    scratch: acc (TM,Cp) f32   (adj @ xl partial sums over k)
    """

    def kernel(adj_ref, xl_ref, xr_ref, invdeg_ref, out_ref, acc_ref):
        k = pl.program_id(1)

        @pl.when(k == 0)
        def _():
            acc_ref[...] = jnp.zeros_like(acc_ref)

        # Dominant cost: bf16 x bf16 -> f32 MXU accumulate of adj @ (x @ W_l).
        acc_ref[...] += jnp.dot(adj_ref[...], xl_ref[...],
                                preferred_element_type=jnp.float32)

        @pl.when(k == pl.num_programs(1) - 1)
        def _():
            # Epilogue in f32 on the VPU: mean scaling + self/root term (+ bias
            # already folded into xr) + activation.
            o = acc_ref[...] * invdeg_ref[...] + xr_ref[...].astype(jnp.float32)

            if epilogue == "relu":
                o = jnp.maximum(o, 0.0)
            else:  # "log_softmax" over the valid (unpadded) columns only
                col = jax.lax.broadcasted_iota(jnp.int32, o.shape, 1)
                o = jnp.where(col < valid_cols, o, jnp.float32(-1e30))
                m = jnp.max(o, axis=-1, keepdims=True)
                z = o - m
                lse = jnp.log(jnp.sum(jnp.exp(z), axis=-1, keepdims=True))
                o = z - lse

            out_ref[...] = o.astype(out_ref.dtype)

    return kernel


# ----------------------------- layer ---------------------------------------- #

def _sage_layer(x, adj_bf16, inv_deg, w_l, w_r, b, *,
                epilogue, valid_cols, out_dtype):
    """One SAGEConv layer. x:(Np,Cin_p), weights already padded to 128 multiples."""
    Np = adj_bf16.shape[0]
    c_in = x.shape[1]
    c_out = w_l.shape[1]
    TM = _pick_tile(Np)
    TK = _pick_tile(Np)

    # Fused transform (O(N) work): xcat = x @ [W_l | W_r] + [0 | b].
    # Bias only enters the self/root term (the reference adds b outside the
    # mean aggregation), so it is folded into the W_r half.
    w_cat = jnp.concatenate([w_l, w_r], axis=1)
    b_cat = jnp.concatenate([jnp.zeros_like(b), b], axis=1)

    xcat = pl.pallas_call(
        _linear_kernel,
        out_shape=jax.ShapeDtypeStruct((Np, 2 * c_out), jnp.bfloat16),
        grid_spec=pltpu.PrefetchScalarGridSpec(
            num_scalar_prefetch=0,
            grid=(Np // TM,),
            in_specs=[
                pl.BlockSpec((TM, c_in), lambda i: (i, 0)),       # x row tile
                pl.BlockSpec(w_cat.shape, lambda i: (0, 0)),      # weights (resident)
                pl.BlockSpec(b_cat.shape, lambda i: (0, 0)),      # bias (resident)
            ],
            out_specs=pl.BlockSpec((TM, 2 * c_out), lambda i: (i, 0)),
        ),
        compiler_params=pltpu.CompilerParams(
            dimension_semantics=("parallel",)),
    )(x, w_cat, b_cat)

    # Aggregation kernel: O(N^2) adjacency matmul at width c_out, f32 acc.
    kernel = _make_agg_kernel(epilogue, valid_cols)
    return pl.pallas_call(
        kernel,
        out_shape=jax.ShapeDtypeStruct((Np, c_out), out_dtype),
        grid_spec=pltpu.PrefetchScalarGridSpec(
            num_scalar_prefetch=0,
            grid=(Np // TM, Np // TK),
            in_specs=[
                pl.BlockSpec((TM, TK), lambda i, k: (i, k)),      # adj tile
                pl.BlockSpec((TK, c_out), lambda i, k: (k, 0)),   # xl = x@W_l (neighbor rows)
                pl.BlockSpec((TM, c_out), lambda i, k: (i, 1)),   # xr = x@W_r + b (self rows)
                pl.BlockSpec((TM, 1), lambda i, k: (i, 0)),       # inv_deg
            ],
            out_specs=pl.BlockSpec((TM, c_out), lambda i, k: (i, 0)),
            scratch_shapes=[pltpu.VMEM((TM, c_out), jnp.float32)],
        ),
        compiler_params=pltpu.CompilerParams(
            dimension_semantics=("parallel", "arbitrary")),
    )(adj_bf16, xcat, xcat, inv_deg)


# ----------------------------- forward -------------------------------------- #

@jax.jit
def graphsage_forward(x, adj, params):
    N, in_c = x.shape
    h_c = params["w1l"].shape[1]
    out_c = params["w2l"].shape[1]

    in_p = _round_up(in_c, 128)
    h_p = _round_up(h_c, 128)
    out_p = _round_up(out_c, 128)
    Np = _round_up(N, 128)

    # Pad adjacency / features so every tile is (8,128)-aligned; padded rows
    # are isolated (zero rows/cols) and sliced off at the end.
    adj_p = _pad2(adj.astype(jnp.float32), (Np, Np))
    inv_deg = 1.0 / jnp.maximum(jnp.sum(adj_p, axis=-1, keepdims=True), 1.0)
    adj_bf16 = adj_p.astype(jnp.bfloat16)      # 0/1 entries -> exact in bf16
    x_p = _pad2(x.astype(jnp.float32), (Np, in_p))

    # Zero-pad weight dims to 128 multiples -> lane-dense loads/stores.
    w1l = _pad2(params["w1l"].astype(jnp.float32), (in_p, h_p))
    w1r = _pad2(params["w1r"].astype(jnp.float32), (in_p, h_p))
    b1 = _pad2(params["b1"].astype(jnp.float32), (1, h_p))
    w2l = _pad2(params["w2l"].astype(jnp.float32), (h_p, out_p))
    w2r = _pad2(params["w2r"].astype(jnp.float32), (h_p, out_p))
    b2 = _pad2(params["b2"].astype(jnp.float32), (1, out_p))

    # Layer 1: relu(SAGEConv) -> bf16 h (halves HBM traffic for layer 2).
    h = _sage_layer(x_p, adj_bf16, inv_deg, w1l, w1r, b1,
                    epilogue="relu", valid_cols=h_p, out_dtype=jnp.bfloat16)
    # TODO(synk): F.dropout(p=0.05) is identity in eval mode; training dropout
    # would use pltpu.prng_seed + pltpu.prng_random_bits in the layer-1 epilogue.

    # Layer 2: log_softmax(SAGEConv) over the valid out_c columns.
    o = _sage_layer(h, adj_bf16, inv_deg, w2l, w2r, b2,
                    epilogue="log_softmax", valid_cols=out_c,
                    out_dtype=jnp.float32)
    return o[:N, :out_c]


# ----------------------------- reference / init ----------------------------- #

def graphsage_ref(x, adj, params):
    deg = jnp.maximum(adj.sum(axis=-1, keepdims=True), 1.0)
    agg1 = (adj @ x) / deg
    h = agg1 @ params["w1l"] + params["b1"] + x @ params["w1r"]
    h = jnp.maximum(h, 0.0)
    agg2 = (adj @ h) / deg
    o = agg2 @ params["w2l"] + params["b2"] + h @ params["w2r"]
    return jax.nn.log_softmax(o, axis=-1)


def init_params(key, in_c, h_c, out_c):
    ks = jax.random.split(key, 4)

    def glorot(k, fan_in, fan_out):
        s = jnp.sqrt(6.0 / (fan_in + fan_out))
        return jax.random.uniform(k, (fan_in, fan_out), jnp.float32, -s, s)

    return {
        "w1l": glorot(ks[0], in_c, h_c),
        "w1r": glorot(ks[1], in_c, h_c),
        "b1": jnp.zeros((1, h_c), jnp.float32),
        "w2l": glorot(ks[2], h_c, out_c),
        "w2r": glorot(ks[3], h_c, out_c),
        "b2": jnp.zeros((1, out_c), jnp.float32),
    }


if __name__ == "__main__":
    key = jax.random.PRNGKey(0)
    N, in_c, h_c, out_c = 128, 32, 64, 16

    kx, kadj, kp = jax.random.split(key, 3)
    x = jax.random.normal(kx, (N, in_c), jnp.float32)
    # random symmetric 0/1 adjacency with self-loops
    a = (jax.random.uniform(kadj, (N, N)) < 0.05).astype(jnp.float32)
    adj = jnp.clip(a + a.T + jnp.eye(N, dtype=jnp.float32), 0.0, 1.0)

    params = init_params(kp, in_c, h_c, out_c)

    out = graphsage_forward(x, adj, params)
    jax.block_until_ready(out)

    # sanity: shape, log_softmax rows exp-sum to ~1, and matches f32 reference
    # (bf16 adjacency/activations -> loose tolerance).
    ref = graphsage_ref(x, adj, params)
    assert out.shape == (N, out_c)
    assert bool(jnp.allclose(jnp.exp(out).sum(axis=-1), 1.0, atol=1e-4))
    assert bool(jnp.allclose(out, ref, atol=0.1)), float(jnp.abs(out - ref).max())
    print("KERNEL_OK")
</pallas_src>

<mosaic_0001>
module attributes {stable_mosaic.version = 11 : i64} {
  func.func @_linear_kernel(%arg0: i32, %arg1: memref<128x128xf32, #tpu.memory_space<vmem>>, %arg2: memref<128x256xf32, #tpu.memory_space<vmem>>, %arg3: memref<1x256xf32, #tpu.memory_space<vmem>>, %arg4: memref<128x256xbf16, #tpu.memory_space<vmem>>) attributes {dimension_semantics = [#tpu.dimension_semantics<parallel>], iteration_bounds = array<i64: 1>, scalar_prefetch = 0 : i64, scratch_operands = 0 : i64, tpu.core_type = #tpu.core_type<tc>, window_params = [{transform_indices = @transform_0, window_bounds = array<i64: 128, 128>}, {pipeline_mode = #tpu.pipeline_mode<synchronous>, transform_indices = @transform_1, window_bounds = array<i64: 128, 256>}, {pipeline_mode = #tpu.pipeline_mode<synchronous>, transform_indices = @transform_2, window_bounds = array<i64: 1, 256>}, {transform_indices = @transform_3, window_bounds = array<i64: 128, 256>}]} {
    %c0 = arith.constant 0 : index
    %c0_0 = arith.constant 0 : index
    %0 = vector.load %arg1[%c0, %c0_0] : memref<128x128xf32, #tpu.memory_space<vmem>>, vector<128x128xf32>
    %c0_1 = arith.constant 0 : index
    %c0_2 = arith.constant 0 : index
    %1 = vector.load %arg2[%c0_1, %c0_2] : memref<128x256xf32, #tpu.memory_space<vmem>>, vector<128x256xf32>
    %cst = arith.constant dense<0.000000e+00> : vector<128x256xf32>
    %2 = tpu.matmul %0, %1, %cst {dimension_numbers = #tpu.dot_dimension_numbers<[1], [0], [0], [1], [0, 0, 1, 1], [], []>} : vector<128x128xf32>, vector<128x256xf32>, vector<128x256xf32> -> vector<128x256xf32>
    %c0_3 = arith.constant 0 : index
    %c0_4 = arith.constant 0 : index
    %3 = vector.load %arg3[%c0_3, %c0_4] : memref<1x256xf32, #tpu.memory_space<vmem>>, vector<1x256xf32>
    %4 = vector.broadcast %3 : vector<1x256xf32> to vector<128x256xf32>
    %5 = arith.addf %2, %4 : vector<128x256xf32>
    %6 = arith.truncf %5 : vector<128x256xf32> to vector<128x256xbf16>
    %c0_5 = arith.constant 0 : index
    %c0_6 = arith.constant 0 : index
    %7 = vector.load %arg4[%c0_5, %c0_6] : memref<128x256xbf16, #tpu.memory_space<vmem>>, vector<128x256xbf16>
    tpu.vector_store %arg4[%c0_5, %c0_6], %6 {strides = array<i32>} : memref<128x256xbf16, #tpu.memory_space<vmem>>, vector<128x256xbf16>,
    return
  }
  func.func @transform_0(%arg0: i32) -> (i32, i32) {
    %c0_i32 = arith.constant 0 : i32
    %c0_i32_0 = arith.constant 0 : i32
    return %arg0, %c0_i32 : i32, i32
  }
  func.func @transform_1(%arg0: i32) -> (i32, i32) {
    %c0_i32 = arith.constant 0 : i32
    %c0_i32_0 = arith.constant 0 : i32
    %c0_i32_1 = arith.constant 0 : i32
    return %c0_i32, %c0_i32_0 : i32, i32
  }
  func.func @transform_2(%arg0: i32) -> (i32, i32) {
    %c0_i32 = arith.constant 0 : i32
    %c0_i32_0 = arith.constant 0 : i32
    %c0_i32_1 = arith.constant 0 : i32
    return %c0_i32, %c0_i32_0 : i32, i32
  }
  func.func @transform_3(%arg0: i32) -> (i32, i32) {
    %c0_i32 = arith.constant 0 : i32
    %c0_i32_0 = arith.constant 0 : i32
    return %arg0, %c0_i32 : i32, i32
  }
}

module attributes {stable_mosaic.version = 11 : i64} {
  func.func @kernel(%arg0: i32, %arg1: i32, %arg2: memref<128x128xbf16, #tpu.memory_space<vmem>>, %arg3: memref<128x128xbf16, #tpu.memory_space<vmem>>, %arg4: memref<128x128xbf16, #tpu.memory_space<vmem>>, %arg5: memref<128x1xf32, #tpu.memory_space<vmem>>, %arg6: memref<128x128xbf16, #tpu.memory_space<vmem>>, %arg7: memref<128x128xf32, #tpu.memory_space<vmem>>) attributes {dimension_semantics = [#tpu.dimension_semantics<parallel>, #tpu.dimension_semantics<arbitrary>], iteration_bounds = array<i64: 1, 1>, scalar_prefetch = 0 : i64, scratch_operands = 1 : i64, tpu.core_type = #tpu.core_type<tc>, window_params = [{transform_indices = @transform_0, window_bounds = array<i64: 128, 128>}, {transform_indices = @transform_1, window_bounds = array<i64: 128, 128>}, {transform_indices = @transform_2, window_bounds = array<i64: 128, 128>}, {transform_indices = @transform_3, window_bounds = array<i64: 128, 1>}, {transform_indices = @transform_4, window_bounds = array<i64: 128, 128>}]} {
    %c0_i32 = arith.constant 0 : i32
    %0 = arith.cmpi eq, %arg1, %c0_i32 : i32
    %1 = arith.extui %0 : i1 to i32
    %c0_i32_0 = arith.constant 0 : i32
    %2 = arith.cmpi ne, %1, %c0_i32_0 : i32
    scf.if %2 {
      %cst_10 = arith.constant 0.000000e+00 : f32
      %12 = vector.broadcast %cst_10 : f32 to vector<128x128xf32>
      %c0_11 = arith.constant 0 : index
      %c0_12 = arith.constant 0 : index
      %13 = vector.load %arg7[%c0_11, %c0_12] : memref<128x128xf32, #tpu.memory_space<vmem>>, vector<128x128xf32>
      tpu.vector_store %arg7[%c0_11, %c0_12], %12 {strides = array<i32>} : memref<128x128xf32, #tpu.memory_space<vmem>>, vector<128x128xf32>,
    } else {
    }
    %c0 = arith.constant 0 : index
    %c0_1 = arith.constant 0 : index
    %3 = vector.load %arg7[%c0, %c0_1] : memref<128x128xf32, #tpu.memory_space<vmem>>, vector<128x128xf32>
    %c0_2 = arith.constant 0 : index
    %c0_3 = arith.constant 0 : index
    %4 = vector.load %arg2[%c0_2, %c0_3] : memref<128x128xbf16, #tpu.memory_space<vmem>>, vector<128x128xbf16>
    %c0_4 = arith.constant 0 : index
    %c0_5 = arith.constant 0 : index
    %5 = vector.load %arg3[%c0_4, %c0_5] : memref<128x128xbf16, #tpu.memory_space<vmem>>, vector<128x128xbf16>
    %cst = arith.constant dense<0.000000e+00> : vector<128x128xf32>
    %6 = tpu.matmul %4, %5, %cst {dimension_numbers = #tpu.dot_dimension_numbers<[1], [0], [0], [1], [0, 0, 1, 1], [], []>} : vector<128x128xbf16>, vector<128x128xbf16>, vector<128x128xf32> -> vector<128x128xf32>
    %7 = arith.addf %3, %6 : vector<128x128xf32>
    %c0_6 = arith.constant 0 : index
    %c0_7 = arith.constant 0 : index
    %8 = vector.load %arg7[%c0_6, %c0_7] : memref<128x128xf32, #tpu.memory_space<vmem>>, vector<128x128xf32>
    tpu.vector_store %arg7[%c0_6, %c0_7], %7 {strides = array<i32>} : memref<128x128xf32, #tpu.memory_space<vmem>>, vector<128x128xf32>,
    %c0_i32_8 = arith.constant 0 : i32
    %9 = arith.cmpi eq, %arg1, %c0_i32_8 : i32
    %10 = arith.extui %9 : i1 to i32
    %c0_i32_9 = arith.constant 0 : i32
    %11 = arith.cmpi ne, %10, %c0_i32_9 : i32
    scf.if %11 {
      %c0_10 = arith.constant 0 : index
      %c0_11 = arith.constant 0 : index
      %12 = vector.load %arg7[%c0_10, %c0_11] : memref<128x128xf32, #tpu.memory_space<vmem>>, vector<128x128xf32>
      %c0_12 = arith.constant 0 : index
      %c0_13 = arith.constant 0 : index
      %13 = vector.load %arg5[%c0_12, %c0_13] : memref<128x1xf32, #tpu.memory_space<vmem>>, vector<128x1xf32>
      %14 = vector.broadcast %13 : vector<128x1xf32> to vector<128x128xf32>
      %15 = arith.mulf %12, %14 : vector<128x128xf32>
      %c0_14 = arith.constant 0 : index
      %c0_15 = arith.constant 0 : index
      %16 = vector.load %arg4[%c0_14, %c0_15] : memref<128x128xbf16, #tpu.memory_space<vmem>>, vector<128x128xbf16>
      %17 = arith.extf %16 : vector<128x128xbf16> to vector<128x128xf32>
      %18 = arith.addf %15, %17 : vector<128x128xf32>
      %cst_16 = arith.constant 0.000000e+00 : f32
      %19 = vector.broadcast %cst_16 : f32 to vector<128x128xf32>
      %20 = arith.maximumf %18, %19 : vector<128x128xf32>
      %21 = arith.truncf %20 : vector<128x128xf32> to vector<128x128xbf16>
      %c0_17 = arith.constant 0 : index
      %c0_18 = arith.constant 0 : index
      %22 = vector.load %arg6[%c0_17, %c0_18] : memref<128x128xbf16, #tpu.memory_space<vmem>>, vector<128x128xbf16>
      tpu.vector_store %arg6[%c0_17, %c0_18], %21 {strides = array<i32>} : memref<128x128xbf16, #tpu.memory_space<vmem>>, vector<128x128xbf16>,
    } else {
    }
    return
  }
  func.func @transform_0(%arg0: i32, %arg1: i32) -> (i32, i32) {
    %c0_i32 = arith.constant 0 : i32
    return %arg0, %arg1 : i32, i32
  }
  func.func @transform_1(%arg0: i32, %arg1: i32) -> (i32, i32) {
    %c0_i32 = arith.constant 0 : i32
    %c0_i32_0 = arith.constant 0 : i32
    return %arg1, %c0_i32 : i32, i32
  }
  func.func @transform_2(%arg0: i32, %arg1: i32) -> (i32, i32) {
    %c1_i32 = arith.constant 1 : i32
    %c0_i32 = arith.constant 0 : i32
    return %arg0, %c1_i32 : i32, i32
  }
  func.func @transform_3(%arg0: i32, %arg1: i32) -> (i32, i32) {
    %c0_i32 = arith.constant 0 : i32
    %c0_i32_0 = arith.constant 0 : i32
    return %arg0, %c0_i32 : i32, i32
  }
  func.func @transform_4(%arg0: i32, %arg1: i32) -> (i32, i32) {
    %c0_i32 = arith.constant 0 : i32
    %c0_i32_0 = arith.constant 0 : i32
    return %arg0, %c0_i32 : i32, i32
  }
}

module attributes {stable_mosaic.version = 11 : i64} {
  func.func @_linear_kernel(%arg0: i32, %arg1: memref<128x128xbf16, #tpu.memory_space<vmem>>, %arg2: memref<128x256xf32, #tpu.memory_space<vmem>>, %arg3: memref<1x256xf32, #tpu.memory_space<vmem>>, %arg4: memref<128x256xbf16, #tpu.memory_space<vmem>>) attributes {dimension_semantics = [#tpu.dimension_semantics<parallel>], iteration_bounds = array<i64: 1>, scalar_prefetch = 0 : i64, scratch_operands = 0 : i64, tpu.core_type = #tpu.core_type<tc>, window_params = [{transform_indices = @transform_0, window_bounds = array<i64: 128, 128>}, {pipeline_mode = #tpu.pipeline_mode<synchronous>, transform_indices = @transform_1, window_bounds = array<i64: 128, 256>}, {pipeline_mode = #tpu.pipeline_mode<synchronous>, transform_indices = @transform_2, window_bounds = array<i64: 1, 256>}, {transform_indices = @transform_3, window_bounds = array<i64: 128, 256>}]} {
    %c0 = arith.constant 0 : index
    %c0_0 = arith.constant 0 : index
    %0 = vector.load %arg1[%c0, %c0_0] : memref<128x128xbf16, #tpu.memory_space<vmem>>, vector<128x128xbf16>
    %1 = arith.extf %0 : vector<128x128xbf16> to vector<128x128xf32>
    %c0_1 = arith.constant 0 : index
    %c0_2 = arith.constant 0 : index
    %2 = vector.load %arg2[%c0_1, %c0_2] : memref<128x256xf32, #tpu.memory_space<vmem>>, vector<128x256xf32>
    %cst = arith.constant dense<0.000000e+00> : vector<128x256xf32>
    %3 = tpu.matmul %1, %2, %cst {dimension_numbers = #tpu.dot_dimension_numbers<[1], [0], [0], [1], [0, 0, 1, 1], [], []>} : vector<128x128xf32>, vector<128x256xf32>, vector<128x256xf32> -> vector<128x256xf32>
    %c0_3 = arith.constant 0 : index
    %c0_4 = arith.constant 0 : index
    %4 = vector.load %arg3[%c0_3, %c0_4] : memref<1x256xf32, #tpu.memory_space<vmem>>, vector<1x256xf32>
    %5 = vector.broadcast %4 : vector<1x256xf32> to vector<128x256xf32>
    %6 = arith.addf %3, %5 : vector<128x256xf32>
    %7 = arith.truncf %6 : vector<128x256xf32> to vector<128x256xbf16>
    %c0_5 = arith.constant 0 : index
    %c0_6 = arith.constant 0 : index
    %8 = vector.load %arg4[%c0_5, %c0_6] : memref<128x256xbf16, #tpu.memory_space<vmem>>, vector<128x256xbf16>
    tpu.vector_store %arg4[%c0_5, %c0_6], %7 {strides = array<i32>} : memref<128x256xbf16, #tpu.memory_space<vmem>>, vector<128x256xbf16>,
    return
  }
  func.func @transform_0(%arg0: i32) -> (i32, i32) {
    %c0_i32 = arith.constant 0 : i32
    %c0_i32_0 = arith.constant 0 : i32
    return %arg0, %c0_i32 : i32, i32
  }
  func.func @transform_1(%arg0: i32) -> (i32, i32) {
    %c0_i32 = arith.constant 0 : i32
    %c0_i32_0 = arith.constant 0 : i32
    %c0_i32_1 = arith.constant 0 : i32
    return %c0_i32, %c0_i32_0 : i32, i32
  }
  func.func @transform_2(%arg0: i32) -> (i32, i32) {
    %c0_i32 = arith.constant 0 : i32
    %c0_i32_0 = arith.constant 0 : i32
    %c0_i32_1 = arith.constant 0 : i32
    return %c0_i32, %c0_i32_0 : i32, i32
  }
  func.func @transform_3(%arg0: i32) -> (i32, i32) {
    %c0_i32 = arith.constant 0 : i32
    %c0_i32_0 = arith.constant 0 : i32
    return %arg0, %c0_i32 : i32, i32
  }
}

module attributes {stable_mosaic.version = 11 : i64} {
  func.func @kernel(%arg0: i32, %arg1: i32, %arg2: memref<128x128xbf16, #tpu.memory_space<vmem>>, %arg3: memref<128x128xbf16, #tpu.memory_space<vmem>>, %arg4: memref<128x128xbf16, #tpu.memory_space<vmem>>, %arg5: memref<128x1xf32, #tpu.memory_space<vmem>>, %arg6: memref<128x128xf32, #tpu.memory_space<vmem>>, %arg7: memref<128x128xf32, #tpu.memory_space<vmem>>) attributes {dimension_semantics = [#tpu.dimension_semantics<parallel>, #tpu.dimension_semantics<arbitrary>], iteration_bounds = array<i64: 1, 1>, scalar_prefetch = 0 : i64, scratch_operands = 1 : i64, tpu.core_type = #tpu.core_type<tc>, window_params = [{transform_indices = @transform_0, window_bounds = array<i64: 128, 128>}, {transform_indices = @transform_1, window_bounds = array<i64: 128, 128>}, {transform_indices = @transform_2, window_bounds = array<i64: 128, 128>}, {transform_indices = @transform_3, window_bounds = array<i64: 128, 1>}, {transform_indices = @transform_4, window_bounds = array<i64: 128, 128>}]} {
    %c0_i32 = arith.constant 0 : i32
    %0 = arith.cmpi eq, %arg1, %c0_i32 : i32
    %1 = arith.extui %0 : i1 to i32
    %c0_i32_0 = arith.constant 0 : i32
    %2 = arith.cmpi ne, %1, %c0_i32_0 : i32
    scf.if %2 {
      %cst_10 = arith.constant 0.000000e+00 : f32
      %12 = vector.broadcast %cst_10 : f32 to vector<128x128xf32>
      %c0_11 = arith.constant 0 : index
      %c0_12 = arith.constant 0 : index
      %13 = vector.load %arg7[%c0_11, %c0_12] : memref<128x128xf32, #tpu.memory_space<vmem>>, vector<128x128xf32>
      tpu.vector_store %arg7[%c0_11, %c0_12], %12 {strides = array<i32>} : memref<128x128xf32, #tpu.memory_space<vmem>>, vector<128x128xf32>,
    } else {
    }
    %c0 = arith.constant 0 : index
    %c0_1 = arith.constant 0 : index
    %3 = vector.load %arg7[%c0, %c0_1] : memref<128x128xf32, #tpu.memory_space<vmem>>, vector<128x128xf32>
    %c0_2 = arith.constant 0 : index
    %c0_3 = arith.constant 0 : index
    %4 = vector.load %arg2[%c0_2, %c0_3] : memref<128x128xbf16, #tpu.memory_space<vmem>>, vector<128x128xbf16>
    %c0_4 = arith.constant 0 : index
    %c0_5 = arith.constant 0 : index
    %5 = vector.load %arg3[%c0_4, %c0_5] : memref<128x128xbf16, #tpu.memory_space<vmem>>, vector<128x128xbf16>
    %cst = arith.constant dense<0.000000e+00> : vector<128x128xf32>
    %6 = tpu.matmul %4, %5, %cst {dimension_numbers = #tpu.dot_dimension_numbers<[1], [0], [0], [1], [0, 0, 1, 1], [], []>} : vector<128x128xbf16>, vector<128x128xbf16>, vector<128x128xf32> -> vector<128x128xf32>
    %7 = arith.addf %3, %6 : vector<128x128xf32>
    %c0_6 = arith.constant 0 : index
    %c0_7 = arith.constant 0 : index
    %8 = vector.load %arg7[%c0_6, %c0_7] : memref<128x128xf32, #tpu.memory_space<vmem>>, vector<128x128xf32>
    tpu.vector_store %arg7[%c0_6, %c0_7], %7 {strides = array<i32>} : memref<128x128xf32, #tpu.memory_space<vmem>>, vector<128x128xf32>,
    %c0_i32_8 = arith.constant 0 : i32
    %9 = arith.cmpi eq, %arg1, %c0_i32_8 : i32
    %10 = arith.extui %9 : i1 to i32
    %c0_i32_9 = arith.constant 0 : i32
    %11 = arith.cmpi ne, %10, %c0_i32_9 : i32
    scf.if %11 {
      %c0_10 = arith.constant 0 : index
      %c0_11 = arith.constant 0 : index
      %12 = vector.load %arg7[%c0_10, %c0_11] : memref<128x128xf32, #tpu.memory_space<vmem>>, vector<128x128xf32>
      %c0_12 = arith.constant 0 : index
      %c0_13 = arith.constant 0 : index
      %13 = vector.load %arg5[%c0_12, %c0_13] : memref<128x1xf32, #tpu.memory_space<vmem>>, vector<128x1xf32>
      %14 = vector.broadcast %13 : vector<128x1xf32> to vector<128x128xf32>
      %15 = arith.mulf %12, %14 : vector<128x128xf32>
      %c0_14 = arith.constant 0 : index
      %c0_15 = arith.constant 0 : index
      %16 = vector.load %arg4[%c0_14, %c0_15] : memref<128x128xbf16, #tpu.memory_space<vmem>>, vector<128x128xbf16>
      %17 = arith.extf %16 : vector<128x128xbf16> to vector<128x128xf32>
      %18 = arith.addf %15, %17 : vector<128x128xf32>
      %19 = tpu.iota {dimensions = array<i32: 1>} : vector<128x128xi32>
      %c16_i32 = arith.constant 16 : i32
      %20 = vector.broadcast %c16_i32 : i32 to vector<128x128xi32>
      %21 = arith.cmpi slt, %19, %20 : vector<128x128xi32>
      %cst_16 = arith.constant -1.000000e+30 : f32
      %22 = vector.broadcast %cst_16 : f32 to vector<128x128xf32>
      %23 = arith.select %21, %18, %22 : vector<128x128xi1>, vector<128x128xf32>
      %cst_17 = arith.constant dense<0xFF800000> : vector<128xf32>
      %24 = vector.multi_reduction <maximumf>, %23, %cst_17 [1] : vector<128x128xf32> to vector<128xf32>
      %25 = vector.shape_cast %24 : vector<128xf32> to vector<128x1xf32>
      %26 = vector.broadcast %25 : vector<128x1xf32> to vector<128x128xf32>
      %27 = arith.subf %23, %26 : vector<128x128xf32>
      %28 = math.exp %27 : vector<128x128xf32>
      %cst_18 = arith.constant dense<0.000000e+00> : vector<128xf32>
      %29 = vector.multi_reduction <add>, %28, %cst_18 [1] : vector<128x128xf32> to vector<128xf32>
      %30 = vector.shape_cast %29 : vector<128xf32> to vector<128x1xf32>
      %31 = math.log %30 : vector<128x1xf32>
      %32 = vector.broadcast %31 : vector<128x1xf32> to vector<128x128xf32>
      %33 = arith.subf %27, %32 : vector<128x128xf32>
      %c0_19 = arith.constant 0 : index
      %c0_20 = arith.constant 0 : index
      %34 = vector.load %arg6[%c0_19, %c0_20] : memref<128x128xf32, #tpu.memory_space<vmem>>, vector<128x128xf32>
      tpu.vector_store %arg6[%c0_19, %c0_20], %33 {strides = array<i32>} : memref<128x128xf32, #tpu.memory_space<vmem>>, vector<128x128xf32>,
    } else {
    }
    return
  }
  func.func @transform_0(%arg0: i32, %arg1: i32) -> (i32, i32) {
    %c0_i32 = arith.constant 0 : i32
    return %arg0, %arg1 : i32, i32
  }
  func.func @transform_1(%arg0: i32, %arg1: i32) -> (i32, i32) {
    %c0_i32 = arith.constant 0 : i32
    %c0_i32_0 = arith.constant 0 : i32
    return %arg1, %c0_i32 : i32, i32
  }
  func.func @transform_2(%arg0: i32, %arg1: i32) -> (i32, i32) {
    %c1_i32 = arith.constant 1 : i32
    %c0_i32 = arith.constant 0 : i32
    return %arg0, %c1_i32 : i32, i32
  }
  func.func @transform_3(%arg0: i32, %arg1: i32) -> (i32, i32) {
    %c0_i32 = arith.constant 0 : i32
    %c0_i32_0 = arith.constant 0 : i32
    return %arg0, %c0_i32 : i32, i32
  }
  func.func @transform_4(%arg0: i32, %arg1: i32) -> (i32, i32) {
    %c0_i32 = arith.constant 0 : i32
    %c0_i32_0 = arith.constant 0 : i32
    return %arg0, %c0_i32 : i32, i32
  }
}

</mosaic_0001>

<llo_original>
// kernel: graphsage_forward.6
$region0: #{graphsage_forward.6}
  #allocation0 [shape = 'u32[]', space=smem, size = 0x4, offset = 0x4, fixed_abs, tag = 'smem constant byte address 0x4 - core index']
  #allocation1 [shape = 'u32[144,128]{1,0:T(1,128)}', space=vmem, size = 0x12000, scoped, tag = 'internal scratch']
  %s0 = inlined_call_operand.vmem [shape: bf16[128,128], index: 0, kind: input, shape index: {}]
  %s1 = inlined_call_operand.vmem [shape: f32[128,256], index: 1, kind: input, shape index: {}]
  %s2 = inlined_call_operand.vmem [shape: f32[1,256], index: 2, kind: input, shape index: {}]
  %s3 = inlined_call_operand.vmem [shape: bf16[128,256], index: 3, kind: output, shape index: {}]
  %s4 = sld [smem:[#allocation0]]
  $region22: #{graphsage_forward.6} parent=0
    _
  %s6 = ssub.s32 1, %s4
  %s7 = scalar_select 0, %s6, %s4
  // Predicated region
  $region2: #{graphsage_forward.6} parent=0 // pred_check
    _
  $region3: #{graphsage_forward.6} parent=0 // pred_check_branch
    %9 = sbr.rel (0) target = $region5
  $region4: #{graphsage_forward.6} parent=0 // pred_region
    _
  $region5: #{graphsage_forward.6} parent=0 // pred_fallthru
    _
  // Predicated region
  $region6: #{graphsage_forward.6} parent=0 // pred_check
    _
  $region7: #{graphsage_forward.6} parent=0 // pred_check_branch
    %11 = sbr.rel (0) target = $region9
  $region8: #{graphsage_forward.6} parent=0 // pred_region
    _
  $region9: #{graphsage_forward.6} parent=0 // pred_fallthru
    _
  // Predicated region
  $region10: #{graphsage_forward.6} parent=0 // pred_check
    _
  $region11: #{graphsage_forward.6} parent=0 // pred_check_branch
    %13 = sbr.rel (0) target = $region13
  $region12: #{graphsage_forward.6} parent=0 // pred_region
    _
  $region13: #{graphsage_forward.6} parent=0 // pred_fallthru
    _
  %v14 = vld [vmem:[%s0] sm:$0xf]
  %v15 = vld [vmem:[%s0 + $0x4] sm:$0xf]
  %v16 = vld [vmem:[%s0 + $0x8] sm:$0xf]
  %v17 = vld [vmem:[%s0 + $0xc] sm:$0xf]
  %v18 = vld [vmem:[%s0 + $0x10] sm:$0xf]
  %v19 = vld [vmem:[%s0 + $0x14] sm:$0xf]
  %v20 = vld [vmem:[%s0 + $0x18] sm:$0xf]
  %v21 = vld [vmem:[%s0 + $0x1c] sm:$0xf]
  %v22 = vld [vmem:[%s0 + $0x20] sm:$0xf]
  %v23 = vld [vmem:[%s0 + $0x24] sm:$0xf]
  %v24 = vld [vmem:[%s0 + $0x28] sm:$0xf]
  %v25 = vld [vmem:[%s0 + $0x2c] sm:$0xf]
  %v26 = vld [vmem:[%s0 + $0x30] sm:$0xf]
  %v27 = vld [vmem:[%s0 + $0x34] sm:$0xf]
  %v28 = vld [vmem:[%s0 + $0x38] sm:$0xf]
  %v29 = vld [vmem:[%s0 + $0x3c] sm:$0xf]
  %v30 = vunpack.c.l.bf16 %v14
  %v31 = vunpack.c.l.bf16 %v15
  %v32 = vunpack.c.l.bf16 %v16
  %v33 = vunpack.c.l.bf16 %v17
  %v34 = vunpack.c.l.bf16 %v18
  %v35 = vunpack.c.l.bf16 %v19
  %v36 = vunpack.c.l.bf16 %v20
  %v37 = vunpack.c.l.bf16 %v21
  %v38 = vunpack.c.l.bf16 %v22
  %v39 = vunpack.c.l.bf16 %v23
  %v40 = vunpack.c.l.bf16 %v24
  %v41 = vunpack.c.l.bf16 %v25
  %v42 = vunpack.c.l.bf16 %v26
  %v43 = vunpack.c.l.bf16 %v27
  %v44 = vunpack.c.l.bf16 %v28
  %v45 = vunpack.c.l.bf16 %v29
  %v46 = vld [vmem:[%s1] sm:$0xff]
  %v47 = vld [vmem:[%s1 + $0x8] sm:$0xff]
  %v48 = vld [vmem:[%s1 + $0x10] sm:$0xff]
  %v49 = vld [vmem:[%s1 + $0x18] sm:$0xff]
  %v50 = vld [vmem:[%s1 + $0x20] sm:$0xff]
  %v51 = vld [vmem:[%s1 + $0x28] sm:$0xff]
  %v52 = vld [vmem:[%s1 + $0x30] sm:$0xff]
  %v53 = vld [vmem:[%s1 + $0x38] sm:$0xff]
  %v54 = vld [vmem:[%s1 + $0x40] sm:$0xff]
  %v55 = vld [vmem:[%s1 + $0x48] sm:$0xff]
  %v56 = vld [vmem:[%s1 + $0x50] sm:$0xff]
  %v57 = vld [vmem:[%s1 + $0x58] sm:$0xff]
  %v58 = vld [vmem:[%s1 + $0x60] sm:$0xff]
  %v59 = vld [vmem:[%s1 + $0x68] sm:$0xff]
  %v60 = vld [vmem:[%s1 + $0x70] sm:$0xff]
  %v61 = vld [vmem:[%s1 + $0x78] sm:$0xff]
  %v62 = vld [vmem:[%s1 + $0x80] sm:$0xff]
  %v63 = vld [vmem:[%s1 + $0x88] sm:$0xff]
  %v64 = vld [vmem:[%s1 + $0x90] sm:$0xff]
  %v65 = vld [vmem:[%s1 + $0x98] sm:$0xff]
  %v66 = vld [vmem:[%s1 + $0xa0] sm:$0xff]
  %v67 = vld [vmem:[%s1 + $0xa8] sm:$0xff]
  %v68 = vld [vmem:[%s1 + $0xb0] sm:$0xff]
  %v69 = vld [vmem:[%s1 + $0xb8] sm:$0xff]
  %v70 = vld [vmem:[%s1 + $0xc0] sm:$0xff]
  %v71 = vld [vmem:[%s1 + $0xc8] sm:$0xff]
  %v72 = vld [vmem:[%s1 + $0xd0] sm:$0xff]
  %v73 = vld [vmem:[%s1 + $0xd8] sm:$0xff]
  %v74 = vld [vmem:[%s1 + $0xe0] sm:$0xff]
  %v75 = vld [vmem:[%s1 + $0xe8] sm:$0xff]
  %v76 = vld [vmem:[%s1 + $0xf0] sm:$0xff]
  %v77 = vld [vmem:[%s1 + $0xf8] sm:$0xff]
  %v78 = vld [vmem:[%s2] sm:$0x3]
  %v80 = vlaneseq
  %v81 = vshrl.u32 %v80, 7
  %v82 = vsub.s32 0, %v81
  %v83 = vrot.slane %v78, %v82
  %v84 = vlaneseq
  %v85 = vshrl.u32 %v84, 7
  %v86 = vsub.s32 1, %v85
  %v87 = vrot.slane %v78, %v86
  %90 = vmatprep.subr.mxu0 %v47
  %91 = vmatpush1.msra.mxu0 %v46
  %92 = vmatprep.subr.mxu0 %v49
  %93 = vmatpush1.msra.mxu0 %v48
  %94 = vmatprep.subr.mxu0 %v51
  %95 = vmatpush1.msra.mxu0 %v50
  %96 = vmatprep.subr.mxu0 %v53
  %97 = vmatpush1.msra.mxu0 %v52
  %98 = vmatprep.subr.mxu0 %v55
  %99 = vmatpush1.msra.mxu0 %v54
  %100 = vmatprep.subr.mxu0 %v57
  %101 = vmatpush1.msra.mxu0 %v56
  %102 = vmatprep.subr.mxu0 %v59
  %103 = vmatpush1.msra.mxu0 %v58
  %104 = vmatprep.subr.mxu0 %v61
  %105 = vmatpush1.msra.mxu0 %v60
  %106 = vmatprep.subr.mxu0 %v63
  %107 = vmatpush1.msra.mxu0 %v62
  %108 = vmatprep.subr.mxu0 %v65
  %109 = vmatpush1.msra.mxu0 %v64
  %110 = vmatprep.subr.mxu0 %v67
  %111 = vmatpush1.msra.mxu0 %v66
  %112 = vmatprep.subr.mxu0 %v69
  %113 = vmatpush1.msra.mxu0 %v68
  %114 = vmatprep.subr.mxu0 %v71
  %115 = vmatpush1.msra.mxu0 %v70
  %116 = vmatprep.subr.mxu0 %v73
  %117 = vmatpush1.msra.mxu0 %v72
  %118 = vmatprep.subr.mxu0 %v75
  %119 = vmatpush1.msra.mxu0 %v74
  %120 = vmatprep.subr.mxu0 %v77
  %121 = vmatpush1.msra.mxu0 %v76
  %122 = vmatprep.subr.mxu0 0.0
  %123 = vmatpush1.msra.mxu0 0.0
  %124 = vmatprep.subr.mxu0 0.0
  %125 = vmatpush1.msra.mxu0 0.0
  %126 = vmatprep.subr.mxu0 0.0
  %127 = vmatpush1.msra.mxu0 0.0
  %128 = vmatprep.subr.mxu0 0.0
  %129 = vmatpush1.msra.mxu0 0.0
  %130 = vmatprep.subr.mxu0 0.0
  %131 = vmatpush1.msra.mxu0 0.0
  %132 = vmatprep.subr.mxu0 0.0
  %133 = vmatpush1.msra.mxu0 0.0
  %134 = vmatprep.subr.mxu0 0.0
  %135 = vmatpush1.msra.mxu0 0.0
  %136 = vmatprep.subr.mxu0 0.0
  %137 = vmatpush1.msra.mxu0 0.0
  %138 = vmatprep.subr.mxu0 0.0
  %139 = vmatpush1.msra.mxu0 0.0
  %140 = vmatprep.subr.mxu0 0.0
  %141 = vmatpush1.msra.mxu0 0.0
  %142 = vmatprep.subr.mxu0 0.0
  %143 = vmatpush1.msra.mxu0 0.0
  %144 = vmatprep.subr.mxu0 0.0
  %145 = vmatpush1.msra.mxu0 0.0
  %146 = vmatprep.subr.mxu0 0.0
  %147 = vmatpush1.msra.mxu0 0.0
  %148 = vmatprep.subr.mxu0 0.0
  %149 = vmatpush1.msra.mxu0 0.0
  %150 = vmatprep.subr.mxu0 0.0
  %151 = vmatpush1.msra.mxu0 0.0
  %152 = vmatprep.subr.mxu0 0.0
  %153 = vmatpush1.msra.mxu0 0.0
  %154 = vmatprep.mubr.f32.mxu0 0.0
  %155 = vmatmul.mubr.f32.gmra.mrb[0].mxu0 %v30
  %v156 = vpop.f32.mrb[0].mxu0
  %v157 = vadd.f32 %v83, %v156
  %v158 = vpop.f32.mrb[0].mxu0
  %v159 = vadd.f32 %v87, %v158
  %160 = vmatprep.mubr.f32.mxu0 0.0
  %161 = vmatmul.mubr.f32.gmra.mrb[0].mxu0 %v31
  %v162 = vpop.f32.mrb[0].mxu0
  %v163 = vadd.f32 %v83, %v162
  %v164 = vpop.f32.mrb[0].mxu0
  %v165 = vadd.f32 %v87, %v164
  %166 = vmatprep.mubr.f32.mxu0 0.0
  %167 = vmatmul.mubr.f32.gmra.mrb[0].mxu0 %v32
  %v168 = vpop.f32.mrb[0].mxu0
  %v169 = vadd.f32 %v83, %v168
  %v170 = vpop.f32.mrb[0].mxu0
  %v171 = vadd.f32 %v87, %v170
  %172 = vmatprep.mubr.f32.mxu0 0.0
  %173 = vmatmul.mubr.f32.gmra.mrb[0].mxu0 %v33
  %v174 = vpop.f32.mrb[0].mxu0
  %v175 = vadd.f32 %v83, %v174
  %v176 = vpop.f32.mrb[0].mxu0
  %v177 = vadd.f32 %v87, %v176
  %178 = vmatprep.mubr.f32.mxu0 0.0
  %179 = vmatmul.mubr.f32.gmra.mrb[0].mxu0 %v34
  %v180 = vpop.f32.mrb[0].mxu0
  %v181 = vadd.f32 %v83, %v180
  %v182 = vpop.f32.mrb[0].mxu0
  %v183 = vadd.f32 %v87, %v182
  %184 = vmatprep.mubr.f32.mxu0 0.0
  %185 = vmatmul.mubr.f32.gmra.mrb[0].mxu0 %v35
  %v186 = vpop.f32.mrb[0].mxu0
  %v187 = vadd.f32 %v83, %v186
  %v188 = vpop.f32.mrb[0].mxu0
  %v189 = vadd.f32 %v87, %v188
  %190 = vmatprep.mubr.f32.mxu0 0.0
  %191 = vmatmul.mubr.f32.gmra.mrb[0].mxu0 %v36
  %v192 = vpop.f32.mrb[0].mxu0
  %v193 = vadd.f32 %v83, %v192
  %v194 = vpop.f32.mrb[0].mxu0
  %v195 = vadd.f32 %v87, %v194
  %196 = vmatprep.mubr.f32.mxu0 0.0
  %197 = vmatmul.mubr.f32.gmra.mrb[0].mxu0 %v37
  %v198 = vpop.f32.mrb[0].mxu0
  %v199 = vadd.f32 %v83, %v198
  %v200 = vpop.f32.mrb[0].mxu0
  %v201 = vadd.f32 %v87, %v200
  %202 = vmatprep.mubr.f32.mxu0 0.0
  %203 = vmatmul.mubr.f32.gmra.mrb[0].mxu0 %v38
  %v204 = vpop.f32.mrb[0].mxu0
  %v205 = vadd.f32 %v83, %v204
  %v206 = vpop.f32.mrb[0].mxu0
  %v207 = vadd.f32 %v87, %v206
  %208 = vmatprep.mubr.f32.mxu0 0.0
  %209 = vmatmul.mubr.f32.gmra.mrb[0].mxu0 %v39
  %v210 = vpop.f32.mrb[0].mxu0
  %v211 = vadd.f32 %v83, %v210
  %v212 = vpop.f32.mrb[0].mxu0
  %v213 = vadd.f32 %v87, %v212
  %214 = vmatprep.mubr.f32.mxu0 0.0
  %215 = vmatmul.mubr.f32.gmra.mrb[0].mxu0 %v40
  %v216 = vpop.f32.mrb[0].mxu0
  %v217 = vadd.f32 %v83, %v216
  %v218 = vpop.f32.mrb[0].mxu0
  %v219 = vadd.f32 %v87, %v218
  %220 = vmatprep.mubr.f32.mxu0 0.0
  %221 = vmatmul.mubr.f32.gmra.mrb[0].mxu0 %v41
  %v222 = vpop.f32.mrb[0].mxu0
  %v223 = vadd.f32 %v83, %v222
  %v224 = vpop.f32.mrb[0].mxu0
  %v225 = vadd.f32 %v87, %v224
  %226 = vmatprep.mubr.f32.mxu0 0.0
  %227 = vmatmul.mubr.f32.gmra.mrb[0].mxu0 %v42
  %v228 = vpop.f32.mrb[0].mxu0
  %v229 = vadd.f32 %v83, %v228
  %v230 = vpop.f32.mrb[0].mxu0
  %v231 = vadd.f32 %v87, %v230
  %232 = vmatprep.mubr.f32.mxu0 0.0
  %233 = vmatmul.mubr.f32.gmra.mrb[0].mxu0 %v43
  %v234 = vpop.f32.mrb[0].mxu0
  %v235 = vadd.f32 %v83, %v234
  %v236 = vpop.f32.mrb[0].mxu0
  %v237 = vadd.f32 %v87, %v236
  %238 = vmatprep.mubr.f32.mxu0 0.0
  %239 = vmatmul.mubr.f32.gmra.mrb[0].mxu0 %v44
  %v240 = vpop.f32.mrb[0].mxu0
  %v241 = vadd.f32 %v83, %v240
  %v242 = vpop.f32.mrb[0].mxu0
  %v243 = vadd.f32 %v87, %v242
  %244 = vmatprep.mubr.f32.mxu0 0.0
  %245 = vmatmul.mubr.f32.gmra.mrb[0].mxu0 %v45
  %v246 = vpop.f32.mrb[0].mxu0
  %v247 = vadd.f32 %v83, %v246
  %v248 = vpop.f32.mrb[0].mxu0
  %v249 = vadd.f32 %v87, %v248
  %250 = vdwg.mxu0
  %v251 = vpack.c.bf16 %v163, %v157
  %v252 = vpack.c.bf16 %v165, %v159
  %v253 = vpack.c.bf16 %v175, %v169
  %v254 = vpack.c.bf16 %v177, %v171
  %v255 = vpack.c.bf16 %v187, %v181
  %v256 = vpack.c.bf16 %v189, %v183
  %v257 = vpack.c.bf16 %v199, %v193
  %v258 = vpack.c.bf16 %v201, %v195
  %v259 = vpack.c.bf16 %v211, %v205
  %v260 = vpack.c.bf16 %v213, %v207
  %v261 = vpack.c.bf16 %v223, %v217
  %v262 = vpack.c.bf16 %v225, %v219
  %v263 = vpack.c.bf16 %v235, %v229
  %v264 = vpack.c.bf16 %v237, %v231
  %v265 = vpack.c.bf16 %v247, %v241
  %v266 = vpack.c.bf16 %v249, %v243
  %v283 = vunpack.c.l.b16 %v251
  %v284 = vunpack.c.l.b16 %v252
  %v285 = vunpack.c.h.b16 %v251
  %v286 = vunpack.c.h.b16 %v252
  %v287 = vunpack.c.l.b16 %v253
  %v288 = vunpack.c.l.b16 %v254
  %v289 = vunpack.c.h.b16 %v253
  %v290 = vunpack.c.h.b16 %v254
  %v291 = vunpack.c.l.b16 %v255
  %v292 = vunpack.c.l.b16 %v256
  %v293 = vunpack.c.h.b16 %v255
  %v294 = vunpack.c.h.b16 %v256
  %v295 = vunpack.c.l.b16 %v257
  %v296 = vunpack.c.l.b16 %v258
  %v297 = vunpack.c.h.b16 %v257
  %v298 = vunpack.c.h.b16 %v258
  %v299 = vunpack.c.l.b16 %v259
  %v300 = vunpack.c.l.b16 %v260
  %v301 = vunpack.c.h.b16 %v259
  %v302 = vunpack.c.h.b16 %v260
  %v303 = vunpack.c.l.b16 %v261
  %v304 = vunpack.c.l.b16 %v262
  %v305 = vunpack.c.h.b16 %v261
  %v306 = vunpack.c.h.b16 %v262
  %v307 = vunpack.c.l.b16 %v263
  %v308 = vunpack.c.l.b16 %v264
  %v309 = vunpack.c.h.b16 %v263
  %v310 = vunpack.c.h.b16 %v264
  %v311 = vunpack.c.l.b16 %v265
  %v312 = vunpack.c.l.b16 %v266
  %v313 = vunpack.c.h.b16 %v265
  %v314 = vunpack.c.h.b16 %v266
  %v315 = vpack.c.b16 %v284, %v283
  %v316 = vpack.c.b16 %v286, %v285
  %v317 = vpack.c.b16 %v288, %v287
  %v318 = vpack.c.b16 %v290, %v289
  %v319 = vpack.c.b16 %v292, %v291
  %v320 = vpack.c.b16 %v294, %v293
  %v321 = vpack.c.b16 %v296, %v295
  %v322 = vpack.c.b16 %v298, %v297
  %v323 = vpack.c.b16 %v300, %v299
  %v324 = vpack.c.b16 %v302, %v301
  %v325 = vpack.c.b16 %v304, %v303
  %v326 = vpack.c.b16 %v306, %v305
  %v327 = vpack.c.b16 %v308, %v307
  %v328 = vpack.c.b16 %v310, %v309
  %v329 = vpack.c.b16 %v312, %v311
  %v330 = vpack.c.b16 %v314, %v313
  %347 = vst [vmem:[%s3] sm:$0xff] %v315
  %348 = vst [vmem:[%s3 + $0x8] sm:$0xff] %v316
  %349 = vst [vmem:[%s3 + $0x10] sm:$0xff] %v317
  %350 = vst [vmem:[%s3 + $0x18] sm:$0xff] %v318
  %351 = vst [vmem:[%s3 + $0x20] sm:$0xff] %v319
  %352 = vst [vmem:[%s3 + $0x28] sm:$0xff] %v320
  %353 = vst [vmem:[%s3 + $0x30] sm:$0xff] %v321
  %354 = vst [vmem:[%s3 + $0x38] sm:$0xff] %v322
  %355 = vst [vmem:[%s3 + $0x40] sm:$0xff] %v323
  %356 = vst [vmem:[%s3 + $0x48] sm:$0xff] %v324
  %357 = vst [vmem:[%s3 + $0x50] sm:$0xff] %v325
  %358 = vst [vmem:[%s3 + $0x58] sm:$0xff] %v326
  %359 = vst [vmem:[%s3 + $0x60] sm:$0xff] %v327
  %360 = vst [vmem:[%s3 + $0x68] sm:$0xff] %v328
  %361 = vst [vmem:[%s3 + $0x70] sm:$0xff] %v329
  %362 = vst [vmem:[%s3 + $0x78] sm:$0xff] %v330
  // Predicated region
  $region14: #{graphsage_forward.6} parent=0 // pred_check
    _
  $region15: #{graphsage_forward.6} parent=0 // pred_check_branch
    %364 = sbr.rel (0) target = $region17
  $region16: #{graphsage_forward.6} parent=0 // pred_region
    _
  $region17: #{graphsage_forward.6} parent=0 // pred_fallthru
    _
  // Predicated region
  $region18: #{graphsage_forward.6} parent=0 // pred_check
    _
  $region19: #{graphsage_forward.6} parent=0 // pred_check_branch
    %366 = sbr.rel (0) target = $region21
  $region20: #{graphsage_forward.6} parent=0 // pred_region
    _
  $region21: #{graphsage_forward.6} parent=0 // pred_fallthru
    _

// kernel: graphsage_forward.4
$region0: #{graphsage_forward.4}
  #allocation0 [shape = 'u32[]', space=smem, size = 0x4, offset = 0x4, fixed_abs, tag = 'smem constant byte address 0x4 - core index']
  #allocation1 [shape = 'u32[144,128]{1,0:T(1,128)}', space=vmem, size = 0x12000, scoped, tag = 'internal scratch']
  %s0 = inlined_call_operand.vmem [shape: f32[128,128], index: 0, kind: input, shape index: {}]
  %s1 = inlined_call_operand.vmem [shape: f32[128,256], index: 1, kind: input, shape index: {}]
  %s2 = inlined_call_operand.vmem [shape: f32[1,256], index: 2, kind: input, shape index: {}]
  %s3 = inlined_call_operand.vmem [shape: bf16[128,256], index: 3, kind: output, shape index: {}]
  %s4 = sld [smem:[#allocation0]]
  $region22: #{graphsage_forward.4} parent=0
    _
  %s6 = ssub.s32 1, %s4
  %s7 = scalar_select 0, %s6, %s4
  // Predicated region
  $region2: #{graphsage_forward.4} parent=0 // pred_check
    _
  $region3: #{graphsage_forward.4} parent=0 // pred_check_branch
    %9 = sbr.rel (0) target = $region5
  $region4: #{graphsage_forward.4} parent=0 // pred_region
    _
  $region5: #{graphsage_forward.4} parent=0 // pred_fallthru
    _
  // Predicated region
  $region6: #{graphsage_forward.4} parent=0 // pred_check
    _
  $region7: #{graphsage_forward.4} parent=0 // pred_check_branch
    %11 = sbr.rel (0) target = $region9
  $region8: #{graphsage_forward.4} parent=0 // pred_region
    _
  $region9: #{graphsage_forward.4} parent=0 // pred_fallthru
    _
  // Predicated region
  $region10: #{graphsage_forward.4} parent=0 // pred_check
    _
  $region11: #{graphsage_forward.4} parent=0 // pred_check_branch
    %13 = sbr.rel (0) target = $region13
  $region12: #{graphsage_forward.4} parent=0 // pred_region
    _
  $region13: #{graphsage_forward.4} parent=0 // pred_fallthru
    _
  %v14 = vld [vmem:[%s0] sm:$0xff]
  %v15 = vld [vmem:[%s0 + $0x8] sm:$0xff]
  %v16 = vld [vmem:[%s0 + $0x10] sm:$0xff]
  %v17 = vld [vmem:[%s0 + $0x18] sm:$0xff]
  %v18 = vld [vmem:[%s0 + $0x20] sm:$0xff]
  %v19 = vld [vmem:[%s0 + $0x28] sm:$0xff]
  %v20 = vld [vmem:[%s0 + $0x30] sm:$0xff]
  %v21 = vld [vmem:[%s0 + $0x38] sm:$0xff]
  %v22 = vld [vmem:[%s0 + $0x40] sm:$0xff]
  %v23 = vld [vmem:[%s0 + $0x48] sm:$0xff]
  %v24 = vld [vmem:[%s0 + $0x50] sm:$0xff]
  %v25 = vld [vmem:[%s0 + $0x58] sm:$0xff]
  %v26 = vld [vmem:[%s0 + $0x60] sm:$0xff]
  %v27 = vld [vmem:[%s0 + $0x68] sm:$0xff]
  %v28 = vld [vmem:[%s0 + $0x70] sm:$0xff]
  %v29 = vld [vmem:[%s0 + $0x78] sm:$0xff]
  %v30 = vld [vmem:[%s1] sm:$0xff]
  %v31 = vld [vmem:[%s1 + $0x8] sm:$0xff]
  %v32 = vld [vmem:[%s1 + $0x10] sm:$0xff]
  %v33 = vld [vmem:[%s1 + $0x18] sm:$0xff]
  %v34 = vld [vmem:[%s1 + $0x20] sm:$0xff]
  %v35 = vld [vmem:[%s1 + $0x28] sm:$0xff]
  %v36 = vld [vmem:[%s1 + $0x30] sm:$0xff]
  %v37 = vld [vmem:[%s1 + $0x38] sm:$0xff]
  %v38 = vld [vmem:[%s1 + $0x40] sm:$0xff]
  %v39 = vld [vmem:[%s1 + $0x48] sm:$0xff]
  %v40 = vld [vmem:[%s1 + $0x50] sm:$0xff]
  %v41 = vld [vmem:[%s1 + $0x58] sm:$0xff]
  %v42 = vld [vmem:[%s1 + $0x60] sm:$0xff]
  %v43 = vld [vmem:[%s1 + $0x68] sm:$0xff]
  %v44 = vld [vmem:[%s1 + $0x70] sm:$0xff]
  %v45 = vld [vmem:[%s1 + $0x78] sm:$0xff]
  %v46 = vld [vmem:[%s1 + $0x80] sm:$0xff]
  %v47 = vld [vmem:[%s1 + $0x88] sm:$0xff]
  %v48 = vld [vmem:[%s1 + $0x90] sm:$0xff]
  %v49 = vld [vmem:[%s1 + $0x98] sm:$0xff]
  %v50 = vld [vmem:[%s1 + $0xa0] sm:$0xff]
  %v51 = vld [vmem:[%s1 + $0xa8] sm:$0xff]
  %v52 = vld [vmem:[%s1 + $0xb0] sm:$0xff]
  %v53 = vld [vmem:[%s1 + $0xb8] sm:$0xff]
  %v54 = vld [vmem:[%s1 + $0xc0] sm:$0xff]
  %v55 = vld [vmem:[%s1 + $0xc8] sm:$0xff]
  %v56 = vld [vmem:[%s1 + $0xd0] sm:$0xff]
  %v57 = vld [vmem:[%s1 + $0xd8] sm:$0xff]
  %v58 = vld [vmem:[%s1 + $0xe0] sm:$0xff]
  %v59 = vld [vmem:[%s1 + $0xe8] sm:$0xff]
  %v60 = vld [vmem:[%s1 + $0xf0] sm:$0xff]
  %v61 = vld [vmem:[%s1 + $0xf8] sm:$0xff]
  %v62 = vld [vmem:[%s2] sm:$0x3]
  %v64 = vlaneseq
  %v65 = vshrl.u32 %v64, 7
  %v66 = vsub.s32 0, %v65
  %v67 = vrot.slane %v62, %v66
  %v68 = vlaneseq
  %v69 = vshrl.u32 %v68, 7
  %v70 = vsub.s32 1, %v69
  %v71 = vrot.slane %v62, %v70
  %74 = vmatprep.subr.mxu0 %v31
  %75 = vmatpush1.msra.mxu0 %v30
  %76 = vmatprep.subr.mxu0 %v33
  %77 = vmatpush1.msra.mxu0 %v32
  %78 = vmatprep.subr.mxu0 %v35
  %79 = vmatpush1.msra.mxu0 %v34
  %80 = vmatprep.subr.mxu0 %v37
  %81 = vmatpush1.msra.mxu0 %v36
  %82 = vmatprep.subr.mxu0 %v39
  %83 = vmatpush1.msra.mxu0 %v38
  %84 = vmatprep.subr.mxu0 %v41
  %85 = vmatpush1.msra.mxu0 %v40
  %86 = vmatprep.subr.mxu0 %v43
  %87 = vmatpush1.msra.mxu0 %v42
  %88 = vmatprep.subr.mxu0 %v45
  %89 = vmatpush1.msra.mxu0 %v44
  %90 = vmatprep.subr.mxu0 %v47
  %91 = vmatpush1.msra.mxu0 %v46
  %92 = vmatprep.subr.mxu0 %v49
  %93 = vmatpush1.msra.mxu0 %v48
  %94 = vmatprep.subr.mxu0 %v51
  %95 = vmatpush1.msra.mxu0 %v50
  %96 = vmatprep.subr.mxu0 %v53
  %97 = vmatpush1.msra.mxu0 %v52
  %98 = vmatprep.subr.mxu0 %v55
  %99 = vmatpush1.msra.mxu0 %v54
  %100 = vmatprep.subr.mxu0 %v57
  %101 = vmatpush1.msra.mxu0 %v56
  %102 = vmatprep.subr.mxu0 %v59
  %103 = vmatpush1.msra.mxu0 %v58
  %104 = vmatprep.subr.mxu0 %v61
  %105 = vmatpush1.msra.mxu0 %v60
  %106 = vmatprep.subr.mxu0 0.0
  %107 = vmatpush1.msra.mxu0 0.0
  %108 = vmatprep.subr.mxu0 0.0
  %109 = vmatpush1.msra.mxu0 0.0
  %110 = vmatprep.subr.mxu0 0.0
  %111 = vmatpush1.msra.mxu0 0.0
  %112 = vmatprep.subr.mxu0 0.0
  %113 = vmatpush1.msra.mxu0 0.0
  %114 = vmatprep.subr.mxu0 0.0
  %115 = vmatpush1.msra.mxu0 0.0
  %116 = vmatprep.subr.mxu0 0.0
  %117 = vmatpush1.msra.mxu0 0.0
  %118 = vmatprep.subr.mxu0 0.0
  %119 = vmatpush1.msra.mxu0 0.0
  %120 = vmatprep.subr.mxu0 0.0
  %121 = vmatpush1.msra.mxu0 0.0
  %122 = vmatprep.subr.mxu0 0.0
  %123 = vmatpush1.msra.mxu0 0.0
  %124 = vmatprep.subr.mxu0 0.0
  %125 = vmatpush1.msra.mxu0 0.0
  %126 = vmatprep.subr.mxu0 0.0
  %127 = vmatpush1.msra.mxu0 0.0
  %128 = vmatprep.subr.mxu0 0.0
  %129 = vmatpush1.msra.mxu0 0.0
  %130 = vmatprep.subr.mxu0 0.0
  %131 = vmatpush1.msra.mxu0 0.0
  %132 = vmatprep.subr.mxu0 0.0
  %133 = vmatpush1.msra.mxu0 0.0
  %134 = vmatprep.subr.mxu0 0.0
  %135 = vmatpush1.msra.mxu0 0.0
  %136 = vmatprep.subr.mxu0 0.0
  %137 = vmatpush1.msra.mxu0 0.0
  %138 = vmatprep.mubr.f32.mxu0 0.0
  %139 = vmatmul.mubr.f32.gmra.mrb[0].mxu0 %v14
  %v140 = vpop.f32.mrb[0].mxu0
  %v141 = vadd.f32 %v67, %v140
  %v142 = vpop.f32.mrb[0].mxu0
  %v143 = vadd.f32 %v71, %v142
  %144 = vmatprep.mubr.f32.mxu0 0.0
  %145 = vmatmul.mubr.f32.gmra.mrb[0].mxu0 %v15
  %v146 = vpop.f32.mrb[0].mxu0
  %v147 = vadd.f32 %v67, %v146
  %v148 = vpop.f32.mrb[0].mxu0
  %v149 = vadd.f32 %v71, %v148
  %150 = vmatprep.mubr.f32.mxu0 0.0
  %151 = vmatmul.mubr.f32.gmra.mrb[0].mxu0 %v16
  %v152 = vpop.f32.mrb[0].mxu0
  %v153 = vadd.f32 %v67, %v152
  %v154 = vpop.f32.mrb[0].mxu0
  %v155 = vadd.f32 %v71, %v154
  %156 = vmatprep.mubr.f32.mxu0 0.0
  %157 = vmatmul.mubr.f32.gmra.mrb[0].mxu0 %v17
  %v158 = vpop.f32.mrb[0].mxu0
  %v159 = vadd.f32 %v67, %v158
  %v160 = vpop.f32.mrb[0].mxu0
  %v161 = vadd.f32 %v71, %v160
  %162 = vmatprep.mubr.f32.mxu0 0.0
  %163 = vmatmul.mubr.f32.gmra.mrb[0].mxu0 %v18
  %v164 = vpop.f32.mrb[0].mxu0
  %v165 = vadd.f32 %v67, %v164
  %v166 = vpop.f32.mrb[0].mxu0
  %v167 = vadd.f32 %v71, %v166
  %168 = vmatprep.mubr.f32.mxu0 0.0
  %169 = vmatmul.mubr.f32.gmra.mrb[0].mxu0 %v19
  %v170 = vpop.f32.mrb[0].mxu0
  %v171 = vadd.f32 %v67, %v170
  %v172 = vpop.f32.mrb[0].mxu0
  %v173 = vadd.f32 %v71, %v172
  %174 = vmatprep.mubr.f32.mxu0 0.0
  %175 = vmatmul.mubr.f32.gmra.mrb[0].mxu0 %v20
  %v176 = vpop.f32.mrb[0].mxu0
  %v177 = vadd.f32 %v67, %v176
  %v178 = vpop.f32.mrb[0].mxu0
  %v179 = vadd.f32 %v71, %v178
  %180 = vmatprep.mubr.f32.mxu0 0.0
  %181 = vmatmul.mubr.f32.gmra.mrb[0].mxu0 %v21
  %v182 = vpop.f32.mrb[0].mxu0
  %v183 = vadd.f32 %v67, %v182
  %v184 = vpop.f32.mrb[0].mxu0
  %v185 = vadd.f32 %v71, %v184
  %186 = vmatprep.mubr.f32.mxu0 0.0
  %187 = vmatmul.mubr.f32.gmra.mrb[0].mxu0 %v22
  %v188 = vpop.f32.mrb[0].mxu0
  %v189 = vadd.f32 %v67, %v188
  %v190 = vpop.f32.mrb[0].mxu0
  %v191 = vadd.f32 %v71, %v190
  %192 = vmatprep.mubr.f32.mxu0 0.0
  %193 = vmatmul.mubr.f32.gmra.mrb[0].mxu0 %v23
  %v194 = vpop.f32.mrb[0].mxu0
  %v195 = vadd.f32 %v67, %v194
  %v196 = vpop.f32.mrb[0].mxu0
  %v197 = vadd.f32 %v71, %v196
  %198 = vmatprep.mubr.f32.mxu0 0.0
  %199 = vmatmul.mubr.f32.gmra.mrb[0].mxu0 %v24
  %v200 = vpop.f32.mrb[0].mxu0
  %v201 = vadd.f32 %v67, %v200
  %v202 = vpop.f32.mrb[0].mxu0
  %v203 = vadd.f32 %v71, %v202
  %204 = vmatprep.mubr.f32.mxu0 0.0
  %205 = vmatmul.mubr.f32.gmra.mrb[0].mxu0 %v25
  %v206 = vpop.f32.mrb[0].mxu0
  %v207 = vadd.f32 %v67, %v206
  %v208 = vpop.f32.mrb[0].mxu0
  %v209 = vadd.f32 %v71, %v208
  %210 = vmatprep.mubr.f32.mxu0 0.0
  %211 = vmatmul.mubr.f32.gmra.mrb[0].mxu0 %v26
  %v212 = vpop.f32.mrb[0].mxu0
  %v213 = vadd.f32 %v67, %v212
  %v214 = vpop.f32.mrb[0].mxu0
  %v215 = vadd.f32 %v71, %v214
  %216 = vmatprep.mubr.f32.mxu0 0.0
  %217 = vmatmul.mubr.f32.gmra.mrb[0].mxu0 %v27
  %v218 = vpop.f32.mrb[0].mxu0
  %v219 = vadd.f32 %v67, %v218
  %v220 = vpop.f32.mrb[0].mxu0
  %v221 = vadd.f32 %v71, %v220
  %222 = vmatprep.mubr.f32.mxu0 0.0
  %223 = vmatmul.mubr.f32.gmra.mrb[0].mxu0 %v28
  %v224 = vpop.f32.mrb[0].mxu0
  %v225 = vadd.f32 %v67, %v224
  %v226 = vpop.f32.mrb[0].mxu0
  %v227 = vadd.f32 %v71, %v226
  %228 = vmatprep.mubr.f32.mxu0 0.0
  %229 = vmatmul.mubr.f32.gmra.mrb[0].mxu0 %v29
  %v230 = vpop.f32.mrb[0].mxu0
  %v231 = vadd.f32 %v67, %v230
  %v232 = vpop.f32.mrb[0].mxu0
  %v233 = vadd.f32 %v71, %v232
  %234 = vdwg.mxu0
  %v235 = vpack.c.bf16 %v147, %v141
  %v236 = vpack.c.bf16 %v149, %v143
  %v237 = vpack.c.bf16 %v159, %v153
  %v238 = vpack.c.bf16 %v161, %v155
  %v239 = vpack.c.bf16 %v171, %v165
  %v240 = vpack.c.bf16 %v173, %v167
  %v241 = vpack.c.bf16 %v183, %v177
  %v242 = vpack.c.bf16 %v185, %v179
  %v243 = vpack.c.bf16 %v195, %v189
  %v244 = vpack.c.bf16 %v197, %v191
  %v245 = vpack.c.bf16 %v207, %v201
  %v246 = vpack.c.bf16 %v209, %v203
  %v247 = vpack.c.bf16 %v219, %v213
  %v248 = vpack.c.bf16 %v221, %v215
  %v249 = vpack.c.bf16 %v231, %v225
  %v250 = vpack.c.bf16 %v233, %v227
  %v267 = vunpack.c.l.b16 %v235
  %v268 = vunpack.c.l.b16 %v236
  %v269 = vunpack.c.h.b16 %v235
  %v270 = vunpack.c.h.b16 %v236
  %v271 = vunpack.c.l.b16 %v237
  %v272 = vunpack.c.l.b16 %v238
  %v273 = vunpack.c.h.b16 %v237
  %v274 = vunpack.c.h.b16 %v238
  %v275 = vunpack.c.l.b16 %v239
  %v276 = vunpack.c.l.b16 %v240
  %v277 = vunpack.c.h.b16 %v239
  %v278 = vunpack.c.h.b16 %v240
  %v279 = vunpack.c.l.b16 %v241
  %v280 = vunpack.c.l.b16 %v242
  %v281 = vunpack.c.h.b16 %v241
  %v282 = vunpack.c.h.b16 %v242
  %v283 = vunpack.c.l.b16 %v243
  %v284 = vunpack.c.l.b16 %v244
  %v285 = vunpack.c.h.b16 %v243
  %v286 = vunpack.c.h.b16 %v244
  %v287 = vunpack.c.l.b16 %v245
  %v288 = vunpack.c.l.b16 %v246
  %v289 = vunpack.c.h.b16 %v245
  %v290 = vunpack.c.h.b16 %v246
  %v291 = vunpack.c.l.b16 %v247
  %v292 = vunpack.c.l.b16 %v248
  %v293 = vunpack.c.h.b16 %v247
  %v294 = vunpack.c.h.b16 %v248
  %v295 = vunpack.c.l.b16 %v249
  %v296 = vunpack.c.l.b16 %v250
  %v297 = vunpack.c.h.b16 %v249
  %v298 = vunpack.c.h.b16 %v250
  %v299 = vpack.c.b16 %v268, %v267
  %v300 = vpack.c.b16 %v270, %v269
  %v301 = vpack.c.b16 %v272, %v271
  %v302 = vpack.c.b16 %v274, %v273
  %v303 = vpack.c.b16 %v276, %v275
  %v304 = vpack.c.b16 %v278, %v277
  %v305 = vpack.c.b16 %v280, %v279
  %v306 = vpack.c.b16 %v282, %v281
  %v307 = vpack.c.b16 %v284, %v283
  %v308 = vpack.c.b16 %v286, %v285
  %v309 = vpack.c.b16 %v288, %v287
  %v310 = vpack.c.b16 %v290, %v289
  %v311 = vpack.c.b16 %v292, %v291
  %v312 = vpack.c.b16 %v294, %v293
  %v313 = vpack.c.b16 %v296, %v295
  %v314 = vpack.c.b16 %v298, %v297
  %331 = vst [vmem:[%s3] sm:$0xff] %v299
  %332 = vst [vmem:[%s3 + $0x8] sm:$0xff] %v300
  %333 = vst [vmem:[%s3 + $0x10] sm:$0xff] %v301
  %334 = vst [vmem:[%s3 + $0x18] sm:$0xff] %v302
  %335 = vst [vmem:[%s3 + $0x20] sm:$0xff] %v303
  %336 = vst [vmem:[%s3 + $0x28] sm:$0xff] %v304
  %337 = vst [vmem:[%s3 + $0x30] sm:$0xff] %v305
  %338 = vst [vmem:[%s3 + $0x38] sm:$0xff] %v306
  %339 = vst [vmem:[%s3 + $0x40] sm:$0xff] %v307
  %340 = vst [vmem:[%s3 + $0x48] sm:$0xff] %v308
  %341 = vst [vmem:[%s3 + $0x50] sm:$0xff] %v309
  %342 = vst [vmem:[%s3 + $0x58] sm:$0xff] %v310
  %343 = vst [vmem:[%s3 + $0x60] sm:$0xff] %v311
  %344 = vst [vmem:[%s3 + $0x68] sm:$0xff] %v312
  %345 = vst [vmem:[%s3 + $0x70] sm:$0xff] %v313
  %346 = vst [vmem:[%s3 + $0x78] sm:$0xff] %v314
  // Predicated region
  $region14: #{graphsage_forward.4} parent=0 // pred_check
    _
  $region15: #{graphsage_forward.4} parent=0 // pred_check_branch
    %348 = sbr.rel (0) target = $region17
  $region16: #{graphsage_forward.4} parent=0 // pred_region
    _
  $region17: #{graphsage_forward.4} parent=0 // pred_fallthru
    _
  // Predicated region
  $region18: #{graphsage_forward.4} parent=0 // pred_check
    _
  $region19: #{graphsage_forward.4} parent=0 // pred_check_branch
    %350 = sbr.rel (0) target = $region21
  $region20: #{graphsage_forward.4} parent=0 // pred_region
    _
  $region21: #{graphsage_forward.4} parent=0 // pred_fallthru
    _

// kernel: graphsage_forward.5
$region0: #{graphsage_forward.5}
  #allocation0 [shape = 'u32[]', space=smem, size = 0x4, offset = 0x4, fixed_abs, tag = 'smem constant byte address 0x4 - core index']
  #allocation1 [shape = 'u32[144,128]{1,0:T(1,128)}', space=vmem, size = 0x12000, scoped, tag = 'internal scratch']
  #allocation2 [shape = 'f32[128,128]{1,0:T(8,128)}', space=vmem, size = 0x10000, scoped, tag = 'scratch operand']
  %s0 = inlined_call_operand.vmem [shape: bf16[128,128], index: 0, kind: input, shape index: {}]
  %s1 = inlined_call_operand.vmem [shape: bf16[128,256], index: 1, kind: input, shape index: {}, may-alias: {1,2}]
  %s2 = inlined_call_operand.vmem [shape: bf16[128,256], index: 2, kind: input, shape index: {}, may-alias: {1,2}]
  %s3 = inlined_call_operand.vmem [shape: f32[128,1], index: 3, kind: input, shape index: {}]
  %s4 = inlined_call_operand.vmem [shape: bf16[128,128], index: 4, kind: output, shape index: {}]
  %s5 = sld [smem:[#allocation0]]
  $region116: #{graphsage_forward.5} parent=0
    _
  %s7 = ssub.s32 1, %s5
  %s8 = scalar_select 0, %s7, %s5
  $region1: #{graphsage_forward.5} parent=0
    #allocation3 [shape = 'u8[32768]{0}', space=vmem, size = 0x8000, scoped, tag = 'input window, operand 1, single buffered']
    #allocation4 [shape = 'u8[32768]{0}', space=vmem, size = 0x8000, scoped, tag = 'input window, operand 2, single buffered']
    // Predicated region
    $region2: #{graphsage_forward.5} parent=1 // pred_check
      _
    $region3: #{graphsage_forward.5} parent=1 // pred_check_branch
      %10 = sbr.rel (0) target = $region5
    $region4: #{graphsage_forward.5} parent=1 // pred_region
      _
    $region5: #{graphsage_forward.5} parent=1 // pred_fallthru
      _
    // Predicated region
    $region6: #{graphsage_forward.5} parent=1 // pred_check
      _
    $region7: #{graphsage_forward.5} parent=1 // pred_check_branch
      %12 = sbr.rel (0) target = $region9
    $region8: #{graphsage_forward.5} parent=1 // pred_region
      // Predicated region
      $region10: #{graphsage_forward.5} parent=8 // pred_check
        _
      $region11: #{graphsage_forward.5} parent=8 // pred_check_branch
        %14 = sbr.rel (0) target = $region13
      $region12: #{graphsage_forward.5} parent=8 // pred_region
        // Predicated region
        $region14: #{graphsage_forward.5} parent=12 // pred_check
          _
        $region15: #{graphsage_forward.5} parent=12 // pred_check_branch
          %16 = sbr.rel target = $region17
        $region16: #{graphsage_forward.5} parent=12 // pred_region
          // Predicated region
          $region29: #{graphsage_forward.5} parent=16 // pred_check
            _
          $region30: #{graphsage_forward.5} parent=16 // pred_check_branch
            %61 = sbr.rel (0) target = $region32
          $region31: #{graphsage_forward.5} parent=16 // pred_region
            loop: start=0, step=1, limit=1
            $region33: #{graphsage_forward.5} parent=31 // loop_pre_header
              _
            $region34: #{graphsage_forward.5} parent=31 // loop_header
              %s63 = sphi 0, %s67
              %p64 = scmp.ge.s32.totalorder %s63, 1
              %s68 = sphi %s1, %s1
              %s69 = sphi [#allocation3], [#allocation3]
            $region35: #{graphsage_forward.5} parent=31 // loop_header_branch
              %66 = sbr.rel (%p64) target = $region39
            $region36: #{graphsage_forward.5} parent=31 // loop_body
              _
            $region37: #{graphsage_forward.5} parent=31 // loop_footer
              %s67 = sadd.s32 1, %s63
            $region38: #{graphsage_forward.5} parent=31 // loop_footer_branch
              %62 = sbr.rel target = $region34
            $region39: #{graphsage_forward.5} parent=31 // loop_exit
              _
            loop: start=0, step=1, limit=1
            $region40: #{graphsage_forward.5} parent=31 // loop_pre_header
              _
            $region41: #{graphsage_forward.5} parent=31 // loop_header
              %s72 = sphi 0, %s76
              %p73 = scmp.ge.s32.totalorder %s72, 1
              %s77 = sphi %s1, %s1
              %s78 = sphi [#allocation3], [#allocation3]
            $region42: #{graphsage_forward.5} parent=31 // loop_header_branch
              %75 = sbr.rel (%p73) target = $region46
            $region43: #{graphsage_forward.5} parent=31 // loop_body
              %v79 = vld [vmem:[%s77] sm:$0xf]
              %80 = vst [vmem:[%s78] sm:$0xf] %v79
              %v81 = vld [vmem:[%s77 + $0x8] sm:$0xf]
              %82 = vst [vmem:[%s78 + $0x4] sm:$0xf] %v81
              %v83 = vld [vmem:[%s77 + $0x10] sm:$0xf]
              %84 = vst [vmem:[%s78 + $0x8] sm:$0xf] %v83
              %v85 = vld [vmem:[%s77 + $0x18] sm:$0xf]
              %86 = vst [vmem:[%s78 + $0xc] sm:$0xf] %v85
              %v87 = vld [vmem:[%s77 + $0x20] sm:$0xf]
              %88 = vst [vmem:[%s78 + $0x10] sm:$0xf] %v87
              %v89 = vld [vmem:[%s77 + $0x28] sm:$0xf]
              %90 = vst [vmem:[%s78 + $0x14] sm:$0xf] %v89
              %v91 = vld [vmem:[%s77 + $0x30] sm:$0xf]
              %92 = vst [vmem:[%s78 + $0x18] sm:$0xf] %v91
              %v93 = vld [vmem:[%s77 + $0x38] sm:$0xf]
              %94 = vst [vmem:[%s78 + $0x1c] sm:$0xf] %v93
              %v95 = vld [vmem:[%s77 + $0x40] sm:$0xf]
              %96 = vst [vmem:[%s78 + $0x20] sm:$0xf] %v95
              %v97 = vld [vmem:[%s77 + $0x48] sm:$0xf]
              %98 = vst [vmem:[%s78 + $0x24] sm:$0xf] %v97
              %v99 = vld [vmem:[%s77 + $0x50] sm:$0xf]
              %100 = vst [vmem:[%s78 + $0x28] sm:$0xf] %v99
              %v101 = vld [vmem:[%s77 + $0x58] sm:$0xf]
              %102 = vst [vmem:[%s78 + $0x2c] sm:$0xf] %v101
              %v103 = vld [vmem:[%s77 + $0x60] sm:$0xf]
              %104 = vst [vmem:[%s78 + $0x30] sm:$0xf] %v103
              %v105 = vld [vmem:[%s77 + $0x68] sm:$0xf]
              %106 = vst [vmem:[%s78 + $0x34] sm:$0xf] %v105
              %v107 = vld [vmem:[%s77 + $0x70] sm:$0xf]
              %108 = vst [vmem:[%s78 + $0x38] sm:$0xf] %v107
              %v109 = vld [vmem:[%s77 + $0x78] sm:$0xf]
              %110 = vst [vmem:[%s78 + $0x3c] sm:$0xf] %v109
            $region44: #{graphsage_forward.5} parent=31 // loop_footer
              %s76 = sadd.s32 1, %s72
            $region45: #{graphsage_forward.5} parent=31 // loop_footer_branch
              %71 = sbr.rel target = $region41
            $region46: #{graphsage_forward.5} parent=31 // loop_exit
              _
          $region32: #{graphsage_forward.5} parent=16 // pred_fallthru
            _
        $region17: #{graphsage_forward.5} parent=12 // pred_fallthru
          _
        // Predicated region
        $region18: #{graphsage_forward.5} parent=12 // pred_check
          _
        $region19: #{graphsage_forward.5} parent=12 // pred_check_branch
          %18 = sbr.rel (0) target = $region21
        $region20: #{graphsage_forward.5} parent=12 // pred_region
          loop: start=0, step=1, limit=1
          $region22: #{graphsage_forward.5} parent=20 // loop_pre_header
            _
          $region23: #{graphsage_forward.5} parent=20 // loop_header
            %s21 = sphi 0, %s25
            %p22 = scmp.ge.s32.totalorder %s21, 1
            %s26 = sphi %s1, %s1
            %s27 = sphi [#allocation3], [#allocation3]
          $region24: #{graphsage_forward.5} parent=20 // loop_header_branch
            %24 = sbr.rel (%p22) target = $region28
          $region25: #{graphsage_forward.5} parent=20 // loop_body
            %v28 = vld [vmem:[%s26] sm:$0xf]
            %29 = vst [vmem:[%s27] sm:$0xf] %v28
            %v30 = vld [vmem:[%s26 + $0x8] sm:$0xf]
            %31 = vst [vmem:[%s27 + $0x4] sm:$0xf] %v30
            %v32 = vld [vmem:[%s26 + $0x10] sm:$0xf]
            %33 = vst [vmem:[%s27 + $0x8] sm:$0xf] %v32
            %v34 = vld [vmem:[%s26 + $0x18] sm:$0xf]
            %35 = vst [vmem:[%s27 + $0xc] sm:$0xf] %v34
            %v36 = vld [vmem:[%s26 + $0x20] sm:$0xf]
            %37 = vst [vmem:[%s27 + $0x10] sm:$0xf] %v36
            %v38 = vld [vmem:[%s26 + $0x28] sm:$0xf]
            %39 = vst [vmem:[%s27 + $0x14] sm:$0xf] %v38
            %v40 = vld [vmem:[%s26 + $0x30] sm:$0xf]
            %41 = vst [vmem:[%s27 + $0x18] sm:$0xf] %v40
            %v42 = vld [vmem:[%s26 + $0x38] sm:$0xf]
            %43 = vst [vmem:[%s27 + $0x1c] sm:$0xf] %v42
            %v44 = vld [vmem:[%s26 + $0x40] sm:$0xf]
            %45 = vst [vmem:[%s27 + $0x20] sm:$0xf] %v44
            %v46 = vld [vmem:[%s26 + $0x48] sm:$0xf]
            %47 = vst [vmem:[%s27 + $0x24] sm:$0xf] %v46
            %v48 = vld [vmem:[%s26 + $0x50] sm:$0xf]
            %49 = vst [vmem:[%s27 + $0x28] sm:$0xf] %v48
            %v50 = vld [vmem:[%s26 + $0x58] sm:$0xf]
            %51 = vst [vmem:[%s27 + $0x2c] sm:$0xf] %v50
            %v52 = vld [vmem:[%s26 + $0x60] sm:$0xf]
            %53 = vst [vmem:[%s27 + $0x30] sm:$0xf] %v52
            %v54 = vld [vmem:[%s26 + $0x68] sm:$0xf]
            %55 = vst [vmem:[%s27 + $0x34] sm:$0xf] %v54
            %v56 = vld [vmem:[%s26 + $0x70] sm:$0xf]
            %57 = vst [vmem:[%s27 + $0x38] sm:$0xf] %v56
            %v58 = vld [vmem:[%s26 + $0x78] sm:$0xf]
            %59 = vst [vmem:[%s27 + $0x3c] sm:$0xf] %v58
          $region26: #{graphsage_forward.5} parent=20 // loop_footer
            %s25 = sadd.s32 1, %s21
          $region27: #{graphsage_forward.5} parent=20 // loop_footer_branch
            %20 = sbr.rel target = $region23
          $region28: #{graphsage_forward.5} parent=20 // loop_exit
            _
        $region21: #{graphsage_forward.5} parent=12 // pred_fallthru
          _
      $region13: #{graphsage_forward.5} parent=8 // pred_fallthru
        _
      %111 = vnop
    $region9: #{graphsage_forward.5} parent=1 // pred_fallthru
      _
    // Predicated region
    $region47: #{graphsage_forward.5} parent=1 // pred_check
      _
    $region48: #{graphsage_forward.5} parent=1 // pred_check_branch
      %113 = sbr.rel (0) target = $region50
    $region49: #{graphsage_forward.5} parent=1 // pred_region
      %s114 = scalar_lea.vmem %s2, 4
      // Predicated region
      $region51: #{graphsage_forward.5} parent=49 // pred_check
        _
      $region52: #{graphsage_forward.5} parent=49 // pred_check_branch
        %116 = sbr.rel (0) target = $region54
      $region53: #{graphsage_forward.5} parent=49 // pred_region
        // Predicated region
        $region55: #{graphsage_forward.5} parent=53 // pred_check
          _
        $region56: #{graphsage_forward.5} parent=53 // pred_check_branch
          %118 = sbr.rel target = $region58
        $region57: #{graphsage_forward.5} parent=53 // pred_region
          // Predicated region
          $region70: #{graphsage_forward.5} parent=57 // pred_check
            _
          $region71: #{graphsage_forward.5} parent=57 // pred_check_branch
            %163 = sbr.rel (0) target = $region73
          $region72: #{graphsage_forward.5} parent=57 // pred_region
            loop: start=0, step=1, limit=1
            $region74: #{graphsage_forward.5} parent=72 // loop_pre_header
              _
            $region75: #{graphsage_forward.5} parent=72 // loop_header
              %s165 = sphi 0, %s169
              %p166 = scmp.ge.s32.totalorder %s165, 1
              %s170 = sphi %s114, %s114
              %s171 = sphi [#allocation4], [#allocation4]
            $region76: #{graphsage_forward.5} parent=72 // loop_header_branch
              %168 = sbr.rel (%p166) target = $region80
            $region77: #{graphsage_forward.5} parent=72 // loop_body
              _
            $region78: #{graphsage_forward.5} parent=72 // loop_footer
              %s169 = sadd.s32 1, %s165
            $region79: #{graphsage_forward.5} parent=72 // loop_footer_branch
              %164 = sbr.rel target = $region75
            $region80: #{graphsage_forward.5} parent=72 // loop_exit
              _
            loop: start=0, step=1, limit=1
            $region81: #{graphsage_forward.5} parent=72 // loop_pre_header
              _
            $region82: #{graphsage_forward.5} parent=72 // loop_header
              %s174 = sphi 0, %s178
              %p175 = scmp.ge.s32.totalorder %s174, 1
              %s179 = sphi %s114, %s114
              %s180 = sphi [#allocation4], [#allocation4]
            $region83: #{graphsage_forward.5} parent=72 // loop_header_branch
              %177 = sbr.rel (%p175) target = $region87
            $region84: #{graphsage_forward.5} parent=72 // loop_body
              %v181 = vld [vmem:[%s179] sm:$0xf]
              %182 = vst [vmem:[%s180] sm:$0xf] %v181
              %v183 = vld [vmem:[%s179 + $0x8] sm:$0xf]
              %184 = vst [vmem:[%s180 + $0x4] sm:$0xf] %v183
              %v185 = vld [vmem:[%s179 + $0x10] sm:$0xf]
              %186 = vst [vmem:[%s180 + $0x8] sm:$0xf] %v185
              %v187 = vld [vmem:[%s179 + $0x18] sm:$0xf]
              %188 = vst [vmem:[%s180 + $0xc] sm:$0xf] %v187
              %v189 = vld [vmem:[%s179 + $0x20] sm:$0xf]
              %190 = vst [vmem:[%s180 + $0x10] sm:$0xf] %v189
              %v191 = vld [vmem:[%s179 + $0x28] sm:$0xf]
              %192 = vst [vmem:[%s180 + $0x14] sm:$0xf] %v191
              %v193 = vld [vmem:[%s179 + $0x30] sm:$0xf]
              %194 = vst [vmem:[%s180 + $0x18] sm:$0xf] %v193
              %v195 = vld [vmem:[%s179 + $0x38] sm:$0xf]
              %196 = vst [vmem:[%s180 + $0x1c] sm:$0xf] %v195
              %v197 = vld [vmem:[%s179 + $0x40] sm:$0xf]
              %198 = vst [vmem:[%s180 + $0x20] sm:$0xf] %v197
              %v199 = vld [vmem:[%s179 + $0x48] sm:$0xf]
              %200 = vst [vmem:[%s180 + $0x24] sm:$0xf] %v199
              %v201 = vld [vmem:[%s179 + $0x50] sm:$0xf]
              %202 = vst [vmem:[%s180 + $0x28] sm:$0xf] %v201
              %v203 = vld [vmem:[%s179 + $0x58] sm:$0xf]
              %204 = vst [vmem:[%s180 + $0x2c] sm:$0xf] %v203
              %v205 = vld [vmem:[%s179 + $0x60] sm:$0xf]
              %206 = vst [vmem:[%s180 + $0x30] sm:$0xf] %v205
              %v207 = vld [vmem:[%s179 + $0x68] sm:$0xf]
              %208 = vst [vmem:[%s180 + $0x34] sm:$0xf] %v207
              %v209 = vld [vmem:[%s179 + $0x70] sm:$0xf]
              %210 = vst [vmem:[%s180 + $0x38] sm:$0xf] %v209
              %v211 = vld [vmem:[%s179 + $0x78] sm:$0xf]
              %212 = vst [vmem:[%s180 + $0x3c] sm:$0xf] %v211
            $region85: #{graphsage_forward.5} parent=72 // loop_footer
              %s178 = sadd.s32 1, %s174
            $region86: #{graphsage_forward.5} parent=72 // loop_footer_branch
              %173 = sbr.rel target = $region82
            $region87: #{graphsage_forward.5} parent=72 // loop_exit
              _
          $region73: #{graphsage_forward.5} parent=57 // pred_fallthru
            _
        $region58: #{graphsage_forward.5} parent=53 // pred_fallthru
          _
        // Predicated region
        $region59: #{graphsage_forward.5} parent=53 // pred_check
          _
        $region60: #{graphsage_forward.5} parent=53 // pred_check_branch
          %120 = sbr.rel (0) target = $region62
        $region61: #{graphsage_forward.5} parent=53 // pred_region
          loop: start=0, step=1, limit=1
          $region63: #{graphsage_forward.5} parent=61 // loop_pre_header
            _
          $region64: #{graphsage_forward.5} parent=61 // loop_header
            %s123 = sphi 0, %s127
            %p124 = scmp.ge.s32.totalorder %s123, 1
            %s128 = sphi %s114, %s114
            %s129 = sphi [#allocation4], [#allocation4]
          $region65: #{graphsage_forward.5} parent=61 // loop_header_branch
            %126 = sbr.rel (%p124) target = $region69
          $region66: #{graphsage_forward.5} parent=61 // loop_body
            %v130 = vld [vmem:[%s128] sm:$0xf]
            %131 = vst [vmem:[%s129] sm:$0xf] %v130
            %v132 = vld [vmem:[%s128 + $0x8] sm:$0xf]
            %133 = vst [vmem:[%s129 + $0x4] sm:$0xf] %v132
            %v134 = vld [vmem:[%s128 + $0x10] sm:$0xf]
            %135 = vst [vmem:[%s129 + $0x8] sm:$0xf] %v134
            %v136 = vld [vmem:[%s128 + $0x18] sm:$0xf]
            %137 = vst [vmem:[%s129 + $0xc] sm:$0xf] %v136
            %v138 = vld [vmem:[%s128 + $0x20] sm:$0xf]
            %139 = vst [vmem:[%s129 + $0x10] sm:$0xf] %v138
            %v140 = vld [vmem:[%s128 + $0x28] sm:$0xf]
            %141 = vst [vmem:[%s129 + $0x14] sm:$0xf] %v140
            %v142 = vld [vmem:[%s128 + $0x30] sm:$0xf]
            %143 = vst [vmem:[%s129 + $0x18] sm:$0xf] %v142
            %v144 = vld [vmem:[%s128 + $0x38] sm:$0xf]
            %145 = vst [vmem:[%s129 + $0x1c] sm:$0xf] %v144
            %v146 = vld [vmem:[%s128 + $0x40] sm:$0xf]
            %147 = vst [vmem:[%s129 + $0x20] sm:$0xf] %v146
            %v148 = vld [vmem:[%s128 + $0x48] sm:$0xf]
            %149 = vst [vmem:[%s129 + $0x24] sm:$0xf] %v148
            %v150 = vld [vmem:[%s128 + $0x50] sm:$0xf]
            %151 = vst [vmem:[%s129 + $0x28] sm:$0xf] %v150
            %v152 = vld [vmem:[%s128 + $0x58] sm:$0xf]
            %153 = vst [vmem:[%s129 + $0x2c] sm:$0xf] %v152
            %v154 = vld [vmem:[%s128 + $0x60] sm:$0xf]
            %155 = vst [vmem:[%s129 + $0x30] sm:$0xf] %v154
            %v156 = vld [vmem:[%s128 + $0x68] sm:$0xf]
            %157 = vst [vmem:[%s129 + $0x34] sm:$0xf] %v156
            %v158 = vld [vmem:[%s128 + $0x70] sm:$0xf]
            %159 = vst [vmem:[%s129 + $0x38] sm:$0xf] %v158
            %v160 = vld [vmem:[%s128 + $0x78] sm:$0xf]
            %161 = vst [vmem:[%s129 + $0x3c] sm:$0xf] %v160
          $region67: #{graphsage_forward.5} parent=61 // loop_footer
            %s127 = sadd.s32 1, %s123
          $region68: #{graphsage_forward.5} parent=61 // loop_footer_branch
            %122 = sbr.rel target = $region64
          $region69: #{graphsage_forward.5} parent=61 // loop_exit
            _
        $region62: #{graphsage_forward.5} parent=53 // pred_fallthru
          _
      $region54: #{graphsage_forward.5} parent=49 // pred_fallthru
        _
      %213 = vnop
    $region50: #{graphsage_forward.5} parent=1 // pred_fallthru
      _
    // Predicated region
    $region88: #{graphsage_forward.5} parent=1 // pred_check
      _
    $region89: #{graphsage_forward.5} parent=1 // pred_check_branch
      %215 = sbr.rel (0) target = $region91
    $region90: #{graphsage_forward.5} parent=1 // pred_region
      _
    $region91: #{graphsage_forward.5} parent=1 // pred_fallthru
      _
    // Predicated region
    $region92: #{graphsage_forward.5} parent=1 // pred_check
      _
    $region93: #{graphsage_forward.5} parent=1 // pred_check_branch
      %217 = sbr.rel (0) target = $region95
    $region94: #{graphsage_forward.5} parent=1 // pred_region
      _
    $region95: #{graphsage_forward.5} parent=1 // pred_fallthru
      _
    // Predicated region
    $region96: #{graphsage_forward.5} parent=1 // pred_check
      _
    $region97: #{graphsage_forward.5} parent=1 // pred_check_branch
      %219 = sbr.rel (0) target = $region99
    $region98: #{graphsage_forward.5} parent=1 // pred_region
      _
    $region99: #{graphsage_forward.5} parent=1 // pred_fallthru
      _
    %p221 = scmp.eq.s32.totalorder 0, 0
    // Predicated region
    $region100: #{graphsage_forward.5} parent=1 // pred_check
      %p222 = pneg %p221
    $region101: #{graphsage_forward.5} parent=1 // pred_check_branch
      %224 = sbr.rel (%p222) target = $region103
    $region102: #{graphsage_forward.5} parent=1 // pred_region
      %225 = vst [vmem:[#allocation2] sm:$0xff] 0.0
      %226 = vst [vmem:[#allocation2 + $0x8] sm:$0xff] 0.0
      %227 = vst [vmem:[#allocation2 + $0x10] sm:$0xff] 0.0
      %228 = vst [vmem:[#allocation2 + $0x18] sm:$0xff] 0.0
      %229 = vst [vmem:[#allocation2 + $0x20] sm:$0xff] 0.0
      %230 = vst [vmem:[#allocation2 + $0x28] sm:$0xff] 0.0
      %231 = vst [vmem:[#allocation2 + $0x30] sm:$0xff] 0.0
      %232 = vst [vmem:[#allocation2 + $0x38] sm:$0xff] 0.0
      %233 = vst [vmem:[#allocation2 + $0x40] sm:$0xff] 0.0
      %234 = vst [vmem:[#allocation2 + $0x48] sm:$0xff] 0.0
      %235 = vst [vmem:[#allocation2 + $0x50] sm:$0xff] 0.0
      %236 = vst [vmem:[#allocation2 + $0x58] sm:$0xff] 0.0
      %237 = vst [vmem:[#allocation2 + $0x60] sm:$0xff] 0.0
      %238 = vst [vmem:[#allocation2 + $0x68] sm:$0xff] 0.0
      %239 = vst [vmem:[#allocation2 + $0x70] sm:$0xff] 0.0
      %240 = vst [vmem:[#allocation2 + $0x78] sm:$0xff] 0.0
    $region103: #{graphsage_forward.5} parent=1 // pred_fallthru
      _
    %v241 = vld [vmem:[#allocation2] sm:$0xff]
    %v242 = vld [vmem:[#allocation2 + $0x8] sm:$0xff]
    %v243 = vld [vmem:[#allocation2 + $0x10] sm:$0xff]
    %v244 = vld [vmem:[#allocation2 + $0x18] sm:$0xff]
    %v245 = vld [vmem:[#allocation2 + $0x20] sm:$0xff]
    %v246 = vld [vmem:[#allocation2 + $0x28] sm:$0xff]
    %v247 = vld [vmem:[#allocation2 + $0x30] sm:$0xff]
    %v248 = vld [vmem:[#allocation2 + $0x38] sm:$0xff]
    %v249 = vld [vmem:[#allocation2 + $0x40] sm:$0xff]
    %v250 = vld [vmem:[#allocation2 + $0x48] sm:$0xff]
    %v251 = vld [vmem:[#allocation2 + $0x50] sm:$0xff]
    %v252 = vld [vmem:[#allocation2 + $0x58] sm:$0xff]
    %v253 = vld [vmem:[#allocation2 + $0x60] sm:$0xff]
    %v254 = vld [vmem:[#allocation2 + $0x68] sm:$0xff]
    %v255 = vld [vmem:[#allocation2 + $0x70] sm:$0xff]
    %v256 = vld [vmem:[#allocation2 + $0x78] sm:$0xff]
    %v257 = vld [vmem:[%s0] sm:$0xf]
    %v258 = vld [vmem:[%s0 + $0x4] sm:$0xf]
    %v259 = vld [vmem:[%s0 + $0x8] sm:$0xf]
    %v260 = vld [vmem:[%s0 + $0xc] sm:$0xf]
    %v261 = vld [vmem:[%s0 + $0x10] sm:$0xf]
    %v262 = vld [vmem:[%s0 + $0x14] sm:$0xf]
    %v263 = vld [vmem:[%s0 + $0x18] sm:$0xf]
    %v264 = vld [vmem:[%s0 + $0x1c] sm:$0xf]
    %v265 = vld [vmem:[%s0 + $0x20] sm:$0xf]
    %v266 = vld [vmem:[%s0 + $0x24] sm:$0xf]
    %v267 = vld [vmem:[%s0 + $0x28] sm:$0xf]
    %v268 = vld [vmem:[%s0 + $0x2c] sm:$0xf]
    %v269 = vld [vmem:[%s0 + $0x30] sm:$0xf]
    %v270 = vld [vmem:[%s0 + $0x34] sm:$0xf]
    %v271 = vld [vmem:[%s0 + $0x38] sm:$0xf]
    %v272 = vld [vmem:[%s0 + $0x3c] sm:$0xf]
    %v273 = vld [vmem:[#allocation3] sm:$0xf]
    %v274 = vld [vmem:[#allocation3 + $0x4] sm:$0xf]
    %v275 = vld [vmem:[#allocation3 + $0x8] sm:$0xf]
    %v276 = vld [vmem:[#allocation3 + $0xc] sm:$0xf]
    %v277 = vld [vmem:[#allocation3 + $0x10] sm:$0xf]
    %v278 = vld [vmem:[#allocation3 + $0x14] sm:$0xf]
    %v279 = vld [vmem:[#allocation3 + $0x18] sm:$0xf]
    %v280 = vld [vmem:[#allocation3 + $0x1c] sm:$0xf]
    %v281 = vld [vmem:[#allocation3 + $0x20] sm:$0xf]
    %v282 = vld [vmem:[#allocation3 + $0x24] sm:$0xf]
    %v283 = vld [vmem:[#allocation3 + $0x28] sm:$0xf]
    %v284 = vld [vmem:[#allocation3 + $0x2c] sm:$0xf]
    %v285 = vld [vmem:[#allocation3 + $0x30] sm:$0xf]
    %v286 = vld [vmem:[#allocation3 + $0x34] sm:$0xf]
    %v287 = vld [vmem:[#allocation3 + $0x38] sm:$0xf]
    %v288 = vld [vmem:[#allocation3 + $0x3c] sm:$0xf]
    %v305 = vunpack.c.l.b16 %v257
    %v306 = vunpack.c.l.b16 %v258
    %v307 = vunpack.c.l.b16 %v259
    %v308 = vunpack.c.l.b16 %v260
    %v309 = vunpack.c.l.b16 %v261
    %v310 = vunpack.c.l.b16 %v262
    %v311 = vunpack.c.l.b16 %v263
    %v312 = vunpack.c.l.b16 %v264
    %v313 = vunpack.c.l.b16 %v265
    %v314 = vunpack.c.l.b16 %v266
    %v315 = vunpack.c.l.b16 %v267
    %v316 = vunpack.c.l.b16 %v268
    %v317 = vunpack.c.l.b16 %v269
    %v318 = vunpack.c.l.b16 %v270
    %v319 = vunpack.c.l.b16 %v271
    %v320 = vunpack.c.l.b16 %v272
    %v321 = vpack.c.b16 %v306, %v305
    %v322 = vpack.c.b16 %v308, %v307
    %v323 = vpack.c.b16 %v310, %v309
    %v324 = vpack.c.b16 %v312, %v311
    %v325 = vpack.c.b16 %v314, %v313
    %v326 = vpack.c.b16 %v316, %v315
    %v327 = vpack.c.b16 %v318, %v317
    %v328 = vpack.c.b16 %v320, %v319
    %v353 = vunpack.c.l.b16 %v273
    %v354 = vunpack.c.l.b16 %v274
    %v355 = vunpack.c.l.b16 %v275
    %v356 = vunpack.c.l.b16 %v276
    %v357 = vunpack.c.l.b16 %v277
    %v358 = vunpack.c.l.b16 %v278
    %v359 = vunpack.c.l.b16 %v279
    %v360 = vunpack.c.l.b16 %v280
    %v361 = vunpack.c.l.b16 %v281
    %v362 = vunpack.c.l.b16 %v282
    %v363 = vunpack.c.l.b16 %v283
    %v364 = vunpack.c.l.b16 %v284
    %v365 = vunpack.c.l.b16 %v285
    %v366 = vunpack.c.l.b16 %v286
    %v367 = vunpack.c.l.b16 %v287
    %v368 = vunpack.c.l.b16 %v288
    %v369 = vpack.c.b16 %v354, %v353
    %v370 = vpack.c.b16 %v356, %v355
    %v371 = vpack.c.b16 %v358, %v357
    %v372 = vpack.c.b16 %v360, %v359
    %v373 = vpack.c.b16 %v362, %v361
    %v374 = vpack.c.b16 %v364, %v363
    %v375 = vpack.c.b16 %v366, %v365
    %v376 = vpack.c.b16 %v368, %v367
    %385 = vmatprep.subr.bf16.mxu0 0
    %386 = vmatpush1.bf16.msra.mxu0 %v369
    %387 = vmatprep.subr.bf16.mxu0 0
    %388 = vmatpush1.bf16.msra.mxu0 %v370
    %389 = vmatprep.subr.bf16.mxu0 0
    %390 = vmatpush1.bf16.msra.mxu0 %v371
    %391 = vmatprep.subr.bf16.mxu0 0
    %392 = vmatpush1.bf16.msra.mxu0 %v372
    %393 = vmatprep.subr.bf16.mxu0 0
    %394 = vmatpush1.bf16.msra.mxu0 %v373
    %395 = vmatprep.subr.bf16.mxu0 0
    %396 = vmatpush1.bf16.msra.mxu0 %v374
    %397 = vmatprep.subr.bf16.mxu0 0
    %398 = vmatpush1.bf16.msra.mxu0 %v375
    %399 = vmatprep.subr.bf16.mxu0 0
    %400 = vmatpush1.bf16.msra.mxu0 %v376
    %401 = vmatprep.subr.bf16.mxu0 0
    %402 = vmatpush1.bf16.msra.mxu0 0
    %403 = vmatprep.subr.bf16.mxu0 0
    %404 = vmatpush1.bf16.msra.mxu0 0
    %405 = vmatprep.subr.bf16.mxu0 0
    %406 = vmatpush1.bf16.msra.mxu0 0
    %407 = vmatprep.subr.bf16.mxu0 0
    %408 = vmatpush1.bf16.msra.mxu0 0
    %409 = vmatprep.subr.bf16.mxu0 0
    %410 = vmatpush1.bf16.msra.mxu0 0
    %411 = vmatprep.subr.bf16.mxu0 0
    %412 = vmatpush1.bf16.msra.mxu0 0
    %413 = vmatprep.subr.bf16.mxu0 0
    %414 = vmatpush1.bf16.msra.mxu0 0
    %415 = vmatprep.subr.bf16.mxu0 0
    %416 = vmatpush1.bf16.msra.mxu0 0
    %417 = vmatprep.mubr.bf16.mxu0 0
    %418 = vmatmul.mubr.bf16.gmra.mrb[0].mxu0 %v321
    %v419 = vpop.f32.mrb[0].mxu0
    %v420 = vadd.f32 0.0, %v419
    %v421 = vpop.f32.mrb[0].mxu0
    %v422 = vpop.f32.mrb[0].mxu0
    %v423 = vadd.f32 0.0, %v422
    %v424 = vpop.f32.mrb[0].mxu0
    %425 = vmatprep.mubr.bf16.mxu0 0
    %426 = vmatmul.mubr.bf16.gmra.mrb[0].mxu0 %v322
    %v427 = vpop.f32.mrb[0].mxu0
    %v428 = vadd.f32 0.0, %v427
    %v429 = vpop.f32.mrb[0].mxu0
    %v430 = vpop.f32.mrb[0].mxu0
    %v431 = vadd.f32 0.0, %v430
    %v432 = vpop.f32.mrb[0].mxu0
    %433 = vmatprep.mubr.bf16.mxu0 0
    %434 = vmatmul.mubr.bf16.gmra.mrb[0].mxu0 %v323
    %v435 = vpop.f32.mrb[0].mxu0
    %v436 = vadd.f32 0.0, %v435
    %v437 = vpop.f32.mrb[0].mxu0
    %v438 = vpop.f32.mrb[0].mxu0
    %v439 = vadd.f32 0.0, %v438
    %v440 = vpop.f32.mrb[0].mxu0
    %441 = vmatprep.mubr.bf16.mxu0 0
    %442 = vmatmul.mubr.bf16.gmra.mrb[0].mxu0 %v324
    %v443 = vpop.f32.mrb[0].mxu0
    %v444 = vadd.f32 0.0, %v443
    %v445 = vpop.f32.mrb[0].mxu0
    %v446 = vpop.f32.mrb[0].mxu0
    %v447 = vadd.f32 0.0, %v446
    %v448 = vpop.f32.mrb[0].mxu0
    %449 = vmatprep.mubr.bf16.mxu0 0
    %450 = vmatmul.mubr.bf16.gmra.mrb[0].mxu0 %v325
    %v451 = vpop.f32.mrb[0].mxu0
    %v452 = vadd.f32 0.0, %v451
    %v453 = vpop.f32.mrb[0].mxu0
    %v454 = vpop.f32.mrb[0].mxu0
    %v455 = vadd.f32 0.0, %v454
    %v456 = vpop.f32.mrb[0].mxu0
    %457 = vmatprep.mubr.bf16.mxu0 0
    %458 = vmatmul.mubr.bf16.gmra.mrb[0].mxu0 %v326
    %v459 = vpop.f32.mrb[0].mxu0
    %v460 = vadd.f32 0.0, %v459
    %v461 = vpop.f32.mrb[0].mxu0
    %v462 = vpop.f32.mrb[0].mxu0
    %v463 = vadd.f32 0.0, %v462
    %v464 = vpop.f32.mrb[0].mxu0
    %465 = vmatprep.mubr.bf16.mxu0 0
    %466 = vmatmul.mubr.bf16.gmra.mrb[0].mxu0 %v327
    %v467 = vpop.f32.mrb[0].mxu0
    %v468 = vadd.f32 0.0, %v467
    %v469 = vpop.f32.mrb[0].mxu0
    %v470 = vpop.f32.mrb[0].mxu0
    %v471 = vadd.f32 0.0, %v470
    %v472 = vpop.f32.mrb[0].mxu0
    %473 = vmatprep.mubr.bf16.mxu0 0
    %474 = vmatmul.mubr.bf16.gmra.mrb[0].mxu0 %v328
    %v475 = vpop.f32.mrb[0].mxu0
    %v476 = vadd.f32 0.0, %v475
    %v477 = vpop.f32.mrb[0].mxu0
    %v478 = vpop.f32.mrb[0].mxu0
    %v479 = vadd.f32 0.0, %v478
    %v480 = vpop.f32.mrb[0].mxu0
    %481 = vdwg.mxu0
    %v482 = vadd.f32 %v241, %v420
    %v483 = vadd.f32 %v242, %v423
    %v484 = vadd.f32 %v243, %v428
    %v485 = vadd.f32 %v244, %v431
    %v486 = vadd.f32 %v245, %v436
    %v487 = vadd.f32 %v246, %v439
    %v488 = vadd.f32 %v247, %v444
    %v489 = vadd.f32 %v248, %v447
    %v490 = vadd.f32 %v249, %v452
    %v491 = vadd.f32 %v250, %v455
    %v492 = vadd.f32 %v251, %v460
    %v493 = vadd.f32 %v252, %v463
    %v494 = vadd.f32 %v253, %v468
    %v495 = vadd.f32 %v254, %v471
    %v496 = vadd.f32 %v255, %v476
    %v497 = vadd.f32 %v256, %v479
    %498 = vst [vmem:[#allocation2] sm:$0xff] %v482
    %499 = vst [vmem:[#allocation2 + $0x8] sm:$0xff] %v483
    %500 = vst [vmem:[#allocation2 + $0x10] sm:$0xff] %v484
    %501 = vst [vmem:[#allocation2 + $0x18] sm:$0xff] %v485
    %502 = vst [vmem:[#allocation2 + $0x20] sm:$0xff] %v486
    %503 = vst [vmem:[#allocation2 + $0x28] sm:$0xff] %v487
    %504 = vst [vmem:[#allocation2 + $0x30] sm:$0xff] %v488
    %505 = vst [vmem:[#allocation2 + $0x38] sm:$0xff] %v489
    %506 = vst [vmem:[#allocation2 + $0x40] sm:$0xff] %v490
    %507 = vst [vmem:[#allocation2 + $0x48] sm:$0xff] %v491
    %508 = vst [vmem:[#allocation2 + $0x50] sm:$0xff] %v492
    %509 = vst [vmem:[#allocation2 + $0x58] sm:$0xff] %v493
    %510 = vst [vmem:[#allocation2 + $0x60] sm:$0xff] %v494
    %511 = vst [vmem:[#allocation2 + $0x68] sm:$0xff] %v495
    %512 = vst [vmem:[#allocation2 + $0x70] sm:$0xff] %v496
    %513 = vst [vmem:[#allocation2 + $0x78] sm:$0xff] %v497
    // Predicated region
    $region104: #{graphsage_forward.5} parent=1 // pred_check
      %p514 = pneg %p221
    $region105: #{graphsage_forward.5} parent=1 // pred_check_branch
      %516 = sbr.rel (%p514) target = $region107
    $region106: #{graphsage_forward.5} parent=1 // pred_region
      %v517 = vld [vmem:[#allocation2] sm:$0xff]
      %v518 = vld [vmem:[#allocation2 + $0x8] sm:$0xff]
      %v519 = vld [vmem:[#allocation2 + $0x10] sm:$0xff]
      %v520 = vld [vmem:[#allocation2 + $0x18] sm:$0xff]
      %v521 = vld [vmem:[#allocation2 + $0x20] sm:$0xff]
      %v522 = vld [vmem:[#allocation2 + $0x28] sm:$0xff]
      %v523 = vld [vmem:[#allocation2 + $0x30] sm:$0xff]
      %v524 = vld [vmem:[#allocation2 + $0x38] sm:$0xff]
      %v525 = vld [vmem:[#allocation2 + $0x40] sm:$0xff]
      %v526 = vld [vmem:[#allocation2 + $0x48] sm:$0xff]
      %v527 = vld [vmem:[#allocation2 + $0x50] sm:$0xff]
      %v528 = vld [vmem:[#allocation2 + $0x58] sm:$0xff]
      %v529 = vld [vmem:[#allocation2 + $0x60] sm:$0xff]
      %v530 = vld [vmem:[#allocation2 + $0x68] sm:$0xff]
      %v531 = vld [vmem:[#allocation2 + $0x70] sm:$0xff]
      %v532 = vld [vmem:[#allocation2 + $0x78] sm:$0xff]
      %v533 = vld [vmem:[%s3] sm:$0xff]
      %v534 = vld [vmem:[%s3 + $0x8] sm:$0xff]
      %v535 = vld [vmem:[%s3 + $0x10] sm:$0xff]
      %v536 = vld [vmem:[%s3 + $0x18] sm:$0xff]
      %v537 = vld [vmem:[%s3 + $0x20] sm:$0xff]
      %v538 = vld [vmem:[%s3 + $0x28] sm:$0xff]
      %v539 = vld [vmem:[%s3 + $0x30] sm:$0xff]
      %v540 = vld [vmem:[%s3 + $0x38] sm:$0xff]
      %v541 = vld [vmem:[%s3 + $0x40] sm:$0xff]
      %v542 = vld [vmem:[%s3 + $0x48] sm:$0xff]
      %v543 = vld [vmem:[%s3 + $0x50] sm:$0xff]
      %v544 = vld [vmem:[%s3 + $0x58] sm:$0xff]
      %v545 = vld [vmem:[%s3 + $0x60] sm:$0xff]
      %v546 = vld [vmem:[%s3 + $0x68] sm:$0xff]
      %v547 = vld [vmem:[%s3 + $0x70] sm:$0xff]
      %v548 = vld [vmem:[%s3 + $0x78] sm:$0xff]
      %550 = vset.pattern.permute.xlu0 0
      %551 = vperm.xlu0 %550, %v533
      %v552 = vpop.permute.xlu0 %551
      %555 = vset.pattern.permute.xlu0 0
      %556 = vperm.xlu0 %555, %v534
      %v557 = vpop.permute.xlu0 %556
      %560 = vset.pattern.permute.xlu0 0
      %561 = vperm.xlu0 %560, %v535
      %v562 = vpop.permute.xlu0 %561
      %565 = vset.pattern.permute.xlu0 0
      %566 = vperm.xlu0 %565, %v536
      %v567 = vpop.permute.xlu0 %566
      %570 = vset.pattern.permute.xlu0 0
      %571 = vperm.xlu0 %570, %v537
      %v572 = vpop.permute.xlu0 %571
      %575 = vset.pattern.permute.xlu0 0
      %576 = vperm.xlu0 %575, %v538
      %v577 = vpop.permute.xlu0 %576
      %580 = vset.pattern.permute.xlu0 0
      %581 = vperm.xlu0 %580, %v539
      %v582 = vpop.permute.xlu0 %581
      %585 = vset.pattern.permute.xlu0 0
      %586 = vperm.xlu0 %585, %v540
      %v587 = vpop.permute.xlu0 %586
      %590 = vset.pattern.permute.xlu0 0
      %591 = vperm.xlu0 %590, %v541
      %v592 = vpop.permute.xlu0 %591
      %595 = vset.pattern.permute.xlu0 0
      %596 = vperm.xlu0 %595, %v542
      %v597 = vpop.permute.xlu0 %596
      %600 = vset.pattern.permute.xlu0 0
      %601 = vperm.xlu0 %600, %v543
      %v602 = vpop.permute.xlu0 %601
      %605 = vset.pattern.permute.xlu0 0
      %606 = vperm.xlu0 %605, %v544
      %v607 = vpop.permute.xlu0 %606
      %610 = vset.pattern.permute.xlu0 0
      %611 = vperm.xlu0 %610, %v545
      %v612 = vpop.permute.xlu0 %611
      %615 = vset.pattern.permute.xlu0 0
      %616 = vperm.xlu0 %615, %v546
      %v617 = vpop.permute.xlu0 %616
      %620 = vset.pattern.permute.xlu0 0
      %621 = vperm.xlu0 %620, %v547
      %v622 = vpop.permute.xlu0 %621
      %625 = vset.pattern.permute.xlu0 0
      %626 = vperm.xlu0 %625, %v548
      %v627 = vpop.permute.xlu0 %626
      %v629 = vmul.f32 %v517, %v552
      %v630 = vmul.f32 %v518, %v557
      %v631 = vmul.f32 %v519, %v562
      %v632 = vmul.f32 %v520, %v567
      %v633 = vmul.f32 %v521, %v572
      %v634 = vmul.f32 %v522, %v577
      %v635 = vmul.f32 %v523, %v582
      %v636 = vmul.f32 %v524, %v587
      %v637 = vmul.f32 %v525, %v592
      %v638 = vmul.f32 %v526, %v597
      %v639 = vmul.f32 %v527, %v602
      %v640 = vmul.f32 %v528, %v607
      %v641 = vmul.f32 %v529, %v612
      %v642 = vmul.f32 %v530, %v617
      %v643 = vmul.f32 %v531, %v622
      %v644 = vmul.f32 %v532, %v627
      %v645 = vld [vmem:[#allocation4] sm:$0xf]
      %v646 = vld [vmem:[#allocation4 + $0x4] sm:$0xf]
      %v647 = vld [vmem:[#allocation4 + $0x8] sm:$0xf]
      %v648 = vld [vmem:[#allocation4 + $0xc] sm:$0xf]
      %v649 = vld [vmem:[#allocation4 + $0x10] sm:$0xf]
      %v650 = vld [vmem:[#allocation4 + $0x14] sm:$0xf]
      %v651 = vld [vmem:[#allocation4 + $0x18] sm:$0xf]
      %v652 = vld [vmem:[#allocation4 + $0x1c] sm:$0xf]
      %v653 = vld [vmem:[#allocation4 + $0x20] sm:$0xf]
      %v654 = vld [vmem:[#allocation4 + $0x24] sm:$0xf]
      %v655 = vld [vmem:[#allocation4 + $0x28] sm:$0xf]
      %v656 = vld [vmem:[#allocation4 + $0x2c] sm:$0xf]
      %v657 = vld [vmem:[#allocation4 + $0x30] sm:$0xf]
      %v658 = vld [vmem:[#allocation4 + $0x34] sm:$0xf]
      %v659 = vld [vmem:[#allocation4 + $0x38] sm:$0xf]
      %v660 = vld [vmem:[#allocation4 + $0x3c] sm:$0xf]
      %v661 = vunpack.c.l.bf16 %v645
      %v662 = vunpack.c.l.bf16 %v646
      %v663 = vunpack.c.l.bf16 %v647
      %v664 = vunpack.c.l.bf16 %v648
      %v665 = vunpack.c.l.bf16 %v649
      %v666 = vunpack.c.l.bf16 %v650
      %v667 = vunpack.c.l.bf16 %v651
      %v668 = vunpack.c.l.bf16 %v652
      %v669 = vunpack.c.l.bf16 %v653
      %v670 = vunpack.c.l.bf16 %v654
      %v671 = vunpack.c.l.bf16 %v655
      %v672 = vunpack.c.l.bf16 %v656
      %v673 = vunpack.c.l.bf16 %v657
      %v674 = vunpack.c.l.bf16 %v658
      %v675 = vunpack.c.l.bf16 %v659
      %v676 = vunpack.c.l.bf16 %v660
      %v677 = vadd.f32 %v629, %v661
      %v678 = vadd.f32 %v630, %v662
      %v679 = vadd.f32 %v631, %v663
      %v680 = vadd.f32 %v632, %v664
      %v681 = vadd.f32 %v633, %v665
      %v682 = vadd.f32 %v634, %v666
      %v683 = vadd.f32 %v635, %v667
      %v684 = vadd.f32 %v636, %v668
      %v685 = vadd.f32 %v637, %v669
      %v686 = vadd.f32 %v638, %v670
      %v687 = vadd.f32 %v639, %v671
      %v688 = vadd.f32 %v640, %v672
      %v689 = vadd.f32 %v641, %v673
      %v690 = vadd.f32 %v642, %v674
      %v691 = vadd.f32 %v643, %v675
      %v692 = vadd.f32 %v644, %v676
      %v693 = vmax.f32 %v677, 0.0
      %v694 = vmax.f32 %v678, 0.0
      %v695 = vmax.f32 %v679, 0.0
      %v696 = vmax.f32 %v680, 0.0
      %v697 = vmax.f32 %v681, 0.0
      %v698 = vmax.f32 %v682, 0.0
      %v699 = vmax.f32 %v683, 0.0
      %v700 = vmax.f32 %v684, 0.0
      %v701 = vmax.f32 %v685, 0.0
      %v702 = vmax.f32 %v686, 0.0
      %v703 = vmax.f32 %v687, 0.0
      %v704 = vmax.f32 %v688, 0.0
      %v705 = vmax.f32 %v689, 0.0
      %v706 = vmax.f32 %v690, 0.0
      %v707 = vmax.f32 %v691, 0.0
      %v708 = vmax.f32 %v692, 0.0
      %v709 = vpack.c.bf16 %v694, %v693
      %v710 = vpack.c.bf16 %v696, %v695
      %v711 = vpack.c.bf16 %v698, %v697
      %v712 = vpack.c.bf16 %v700, %v699
      %v713 = vpack.c.bf16 %v702, %v701
      %v714 = vpack.c.bf16 %v704, %v703
      %v715 = vpack.c.bf16 %v706, %v705
      %v716 = vpack.c.bf16 %v708, %v707
      %v725 = vunpack.c.l.b16 %v709
      %v726 = vunpack.c.h.b16 %v709
      %v727 = vunpack.c.l.b16 %v710
      %v728 = vunpack.c.h.b16 %v710
      %v729 = vunpack.c.l.b16 %v711
      %v730 = vunpack.c.h.b16 %v711
      %v731 = vunpack.c.l.b16 %v712
      %v732 = vunpack.c.h.b16 %v712
      %v733 = vunpack.c.l.b16 %v713
      %v734 = vunpack.c.h.b16 %v713
      %v735 = vunpack.c.l.b16 %v714
      %v736 = vunpack.c.h.b16 %v714
      %v737 = vunpack.c.l.b16 %v715
      %v738 = vunpack.c.h.b16 %v715
      %v739 = vunpack.c.l.b16 %v716
      %v740 = vunpack.c.h.b16 %v716
      %v741 = vpack.c.b16 %v725, %v725
      %v742 = vpack.c.b16 %v726, %v726
      %v743 = vpack.c.b16 %v727, %v727
      %v744 = vpack.c.b16 %v728, %v728
      %v745 = vpack.c.b16 %v729, %v729
      %v746 = vpack.c.b16 %v730, %v730
      %v747 = vpack.c.b16 %v731, %v731
      %v748 = vpack.c.b16 %v732, %v732
      %v749 = vpack.c.b16 %v733, %v733
      %v750 = vpack.c.b16 %v734, %v734
      %v751 = vpack.c.b16 %v735, %v735
      %v752 = vpack.c.b16 %v736, %v736
      %v753 = vpack.c.b16 %v737, %v737
      %v754 = vpack.c.b16 %v738, %v738
      %v755 = vpack.c.b16 %v739, %v739
      %v756 = vpack.c.b16 %v740, %v740
      %773 = vst [vmem:[%s4] sm:$0xf] %v741
      %774 = vst [vmem:[%s4 + $0x4] sm:$0xf] %v742
      %775 = vst [vmem:[%s4 + $0x8] sm:$0xf] %v743
      %776 = vst [vmem:[%s4 + $0xc] sm:$0xf] %v744
      %777 = vst [vmem:[%s4 + $0x10] sm:$0xf] %v745
      %778 = vst [vmem:[%s4 + $0x14] sm:$0xf] %v746
      %779 = vst [vmem:[%s4 + $0x18] sm:$0xf] %v747
      %780 = vst [vmem:[%s4 + $0x1c] sm:$0xf] %v748
      %781 = vst [vmem:[%s4 + $0x20] sm:$0xf] %v749
      %782 = vst [vmem:[%s4 + $0x24] sm:$0xf] %v750
      %783 = vst [vmem:[%s4 + $0x28] sm:$0xf] %v751
      %784 = vst [vmem:[%s4 + $0x2c] sm:$0xf] %v752
      %785 = vst [vmem:[%s4 + $0x30] sm:$0xf] %v753
      %786 = vst [vmem:[%s4 + $0x34] sm:$0xf] %v754
      %787 = vst [vmem:[%s4 + $0x38] sm:$0xf] %v755
      %788 = vst [vmem:[%s4 + $0x3c] sm:$0xf] %v756
    $region107: #{graphsage_forward.5} parent=1 // pred_fallthru
      _
    // Predicated region
    $region108: #{graphsage_forward.5} parent=1 // pred_check
      _
    $region109: #{graphsage_forward.5} parent=1 // pred_check_branch
      %790 = sbr.rel (0) target = $region111
    $region110: #{graphsage_forward.5} parent=1 // pred_region
      _
    $region111: #{graphsage_forward.5} parent=1 // pred_fallthru
      _
    // Predicated region
    $region112: #{graphsage_forward.5} parent=1 // pred_check
      _
    $region113: #{graphsage_forward.5} parent=1 // pred_check_branch
      %792 = sbr.rel (0) target = $region115
    $region114: #{graphsage_forward.5} parent=1 // pred_region
      _
    $region115: #{graphsage_forward.5} parent=1 // pred_fallthru
      _

// kernel: graphsage_forward.7
$region0: #{graphsage_forward.7}
  #allocation0 [shape = 'u32[]', space=smem, size = 0x4, offset = 0x4, fixed_abs, tag = 'smem constant byte address 0x4 - core index']
  #allocation1 [shape = 'u32[144,128]{1,0:T(1,128)}', space=vmem, size = 0x12000, scoped, tag = 'internal scratch']
  #allocation2 [shape = 'f32[128,128]{1,0:T(8,128)}', space=vmem, size = 0x10000, scoped, tag = 'scratch operand']
  %s0 = inlined_call_operand.vmem [shape: bf16[128,128], index: 0, kind: input, shape index: {}]
  %s1 = inlined_call_operand.vmem [shape: bf16[128,256], index: 1, kind: input, shape index: {}, may-alias: {1,2}]
  %s2 = inlined_call_operand.vmem [shape: bf16[128,256], index: 2, kind: input, shape index: {}, may-alias: {1,2}]
  %s3 = inlined_call_operand.vmem [shape: f32[128,1], index: 3, kind: input, shape index: {}]
  %s4 = inlined_call_operand.vmem [shape: f32[128,128], index: 4, kind: output, shape index: {}]
  %s5 = sld [smem:[#allocation0]]
  $region116: #{graphsage_forward.7} parent=0
    _
  %s7 = ssub.s32 1, %s5
  %s8 = scalar_select 0, %s7, %s5
  $region1: #{graphsage_forward.7} parent=0
    #allocation3 [shape = 'u8[32768]{0}', space=vmem, size = 0x8000, scoped, tag = 'input window, operand 1, single buffered']
    #allocation4 [shape = 'u8[32768]{0}', space=vmem, size = 0x8000, scoped, tag = 'input window, operand 2, single buffered']
    // Predicated region
    $region2: #{graphsage_forward.7} parent=1 // pred_check
      _
    $region3: #{graphsage_forward.7} parent=1 // pred_check_branch
      %10 = sbr.rel (0) target = $region5
    $region4: #{graphsage_forward.7} parent=1 // pred_region
      _
    $region5: #{graphsage_forward.7} parent=1 // pred_fallthru
      _
    // Predicated region
    $region6: #{graphsage_forward.7} parent=1 // pred_check
      _
    $region7: #{graphsage_forward.7} parent=1 // pred_check_branch
      %12 = sbr.rel (0) target = $region9
    $region8: #{graphsage_forward.7} parent=1 // pred_region
      // Predicated region
      $region10: #{graphsage_forward.7} parent=8 // pred_check
        _
      $region11: #{graphsage_forward.7} parent=8 // pred_check_branch
        %14 = sbr.rel (0) target = $region13
      $region12: #{graphsage_forward.7} parent=8 // pred_region
        // Predicated region
        $region14: #{graphsage_forward.7} parent=12 // pred_check
          _
        $region15: #{graphsage_forward.7} parent=12 // pred_check_branch
          %16 = sbr.rel target = $region17
        $region16: #{graphsage_forward.7} parent=12 // pred_region
          // Predicated region
          $region29: #{graphsage_forward.7} parent=16 // pred_check
            _
          $region30: #{graphsage_forward.7} parent=16 // pred_check_branch
            %61 = sbr.rel (0) target = $region32
          $region31: #{graphsage_forward.7} parent=16 // pred_region
            loop: start=0, step=1, limit=1
            $region33: #{graphsage_forward.7} parent=31 // loop_pre_header
              _
            $region34: #{graphsage_forward.7} parent=31 // loop_header
              %s63 = sphi 0, %s67
              %p64 = scmp.ge.s32.totalorder %s63, 1
              %s68 = sphi %s1, %s1
              %s69 = sphi [#allocation3], [#allocation3]
            $region35: #{graphsage_forward.7} parent=31 // loop_header_branch
              %66 = sbr.rel (%p64) target = $region39
            $region36: #{graphsage_forward.7} parent=31 // loop_body
              _
            $region37: #{graphsage_forward.7} parent=31 // loop_footer
              %s67 = sadd.s32 1, %s63
            $region38: #{graphsage_forward.7} parent=31 // loop_footer_branch
              %62 = sbr.rel target = $region34
            $region39: #{graphsage_forward.7} parent=31 // loop_exit
              _
            loop: start=0, step=1, limit=1
            $region40: #{graphsage_forward.7} parent=31 // loop_pre_header
              _
            $region41: #{graphsage_forward.7} parent=31 // loop_header
              %s72 = sphi 0, %s76
              %p73 = scmp.ge.s32.totalorder %s72, 1
              %s77 = sphi %s1, %s1
              %s78 = sphi [#allocation3], [#allocation3]
            $region42: #{graphsage_forward.7} parent=31 // loop_header_branch
              %75 = sbr.rel (%p73) target = $region46
            $region43: #{graphsage_forward.7} parent=31 // loop_body
              %v79 = vld [vmem:[%s77] sm:$0xf]
              %80 = vst [vmem:[%s78] sm:$0xf] %v79
              %v81 = vld [vmem:[%s77 + $0x8] sm:$0xf]
              %82 = vst [vmem:[%s78 + $0x4] sm:$0xf] %v81
              %v83 = vld [vmem:[%s77 + $0x10] sm:$0xf]
              %84 = vst [vmem:[%s78 + $0x8] sm:$0xf] %v83
              %v85 = vld [vmem:[%s77 + $0x18] sm:$0xf]
              %86 = vst [vmem:[%s78 + $0xc] sm:$0xf] %v85
              %v87 = vld [vmem:[%s77 + $0x20] sm:$0xf]
              %88 = vst [vmem:[%s78 + $0x10] sm:$0xf] %v87
              %v89 = vld [vmem:[%s77 + $0x28] sm:$0xf]
              %90 = vst [vmem:[%s78 + $0x14] sm:$0xf] %v89
              %v91 = vld [vmem:[%s77 + $0x30] sm:$0xf]
              %92 = vst [vmem:[%s78 + $0x18] sm:$0xf] %v91
              %v93 = vld [vmem:[%s77 + $0x38] sm:$0xf]
              %94 = vst [vmem:[%s78 + $0x1c] sm:$0xf] %v93
              %v95 = vld [vmem:[%s77 + $0x40] sm:$0xf]
              %96 = vst [vmem:[%s78 + $0x20] sm:$0xf] %v95
              %v97 = vld [vmem:[%s77 + $0x48] sm:$0xf]
              %98 = vst [vmem:[%s78 + $0x24] sm:$0xf] %v97
              %v99 = vld [vmem:[%s77 + $0x50] sm:$0xf]
              %100 = vst [vmem:[%s78 + $0x28] sm:$0xf] %v99
              %v101 = vld [vmem:[%s77 + $0x58] sm:$0xf]
              %102 = vst [vmem:[%s78 + $0x2c] sm:$0xf] %v101
              %v103 = vld [vmem:[%s77 + $0x60] sm:$0xf]
              %104 = vst [vmem:[%s78 + $0x30] sm:$0xf] %v103
              %v105 = vld [vmem:[%s77 + $0x68] sm:$0xf]
              %106 = vst [vmem:[%s78 + $0x34] sm:$0xf] %v105
              %v107 = vld [vmem:[%s77 + $0x70] sm:$0xf]
              %108 = vst [vmem:[%s78 + $0x38] sm:$0xf] %v107
              %v109 = vld [vmem:[%s77 + $0x78] sm:$0xf]
              %110 = vst [vmem:[%s78 + $0x3c] sm:$0xf] %v109
            $region44: #{graphsage_forward.7} parent=31 // loop_footer
              %s76 = sadd.s32 1, %s72
            $region45: #{graphsage_forward.7} parent=31 // loop_footer_branch
              %71 = sbr.rel target = $region41
            $region46: #{graphsage_forward.7} parent=31 // loop_exit
              _
          $region32: #{graphsage_forward.7} parent=16 // pred_fallthru
            _
        $region17: #{graphsage_forward.7} parent=12 // pred_fallthru
          _
        // Predicated region
        $region18: #{graphsage_forward.7} parent=12 // pred_check
          _
        $region19: #{graphsage_forward.7} parent=12 // pred_check_branch
          %18 = sbr.rel (0) target = $region21
        $region20: #{graphsage_forward.7} parent=12 // pred_region
          loop: start=0, step=1, limit=1
          $region22: #{graphsage_forward.7} parent=20 // loop_pre_header
            _
          $region23: #{graphsage_forward.7} parent=20 // loop_header
            %s21 = sphi 0, %s25
            %p22 = scmp.ge.s32.totalorder %s21, 1
            %s26 = sphi %s1, %s1
            %s27 = sphi [#allocation3], [#allocation3]
          $region24: #{graphsage_forward.7} parent=20 // loop_header_branch
            %24 = sbr.rel (%p22) target = $region28
          $region25: #{graphsage_forward.7} parent=20 // loop_body
            %v28 = vld [vmem:[%s26] sm:$0xf]
            %29 = vst [vmem:[%s27] sm:$0xf] %v28
            %v30 = vld [vmem:[%s26 + $0x8] sm:$0xf]
            %31 = vst [vmem:[%s27 + $0x4] sm:$0xf] %v30
            %v32 = vld [vmem:[%s26 + $0x10] sm:$0xf]
            %33 = vst [vmem:[%s27 + $0x8] sm:$0xf] %v32
            %v34 = vld [vmem:[%s26 + $0x18] sm:$0xf]
            %35 = vst [vmem:[%s27 + $0xc] sm:$0xf] %v34
            %v36 = vld [vmem:[%s26 + $0x20] sm:$0xf]
            %37 = vst [vmem:[%s27 + $0x10] sm:$0xf] %v36
            %v38 = vld [vmem:[%s26 + $0x28] sm:$0xf]
            %39 = vst [vmem:[%s27 + $0x14] sm:$0xf] %v38
            %v40 = vld [vmem:[%s26 + $0x30] sm:$0xf]
            %41 = vst [vmem:[%s27 + $0x18] sm:$0xf] %v40
            %v42 = vld [vmem:[%s26 + $0x38] sm:$0xf]
            %43 = vst [vmem:[%s27 + $0x1c] sm:$0xf] %v42
            %v44 = vld [vmem:[%s26 + $0x40] sm:$0xf]
            %45 = vst [vmem:[%s27 + $0x20] sm:$0xf] %v44
            %v46 = vld [vmem:[%s26 + $0x48] sm:$0xf]
            %47 = vst [vmem:[%s27 + $0x24] sm:$0xf] %v46
            %v48 = vld [vmem:[%s26 + $0x50] sm:$0xf]
            %49 = vst [vmem:[%s27 + $0x28] sm:$0xf] %v48
            %v50 = vld [vmem:[%s26 + $0x58] sm:$0xf]
            %51 = vst [vmem:[%s27 + $0x2c] sm:$0xf] %v50
            %v52 = vld [vmem:[%s26 + $0x60] sm:$0xf]
            %53 = vst [vmem:[%s27 + $0x30] sm:$0xf] %v52
            %v54 = vld [vmem:[%s26 + $0x68] sm:$0xf]
            %55 = vst [vmem:[%s27 + $0x34] sm:$0xf] %v54
            %v56 = vld [vmem:[%s26 + $0x70] sm:$0xf]
            %57 = vst [vmem:[%s27 + $0x38] sm:$0xf] %v56
            %v58 = vld [vmem:[%s26 + $0x78] sm:$0xf]
            %59 = vst [vmem:[%s27 + $0x3c] sm:$0xf] %v58
          $region26: #{graphsage_forward.7} parent=20 // loop_footer
            %s25 = sadd.s32 1, %s21
          $region27: #{graphsage_forward.7} parent=20 // loop_footer_branch
            %20 = sbr.rel target = $region23
          $region28: #{graphsage_forward.7} parent=20 // loop_exit
            _
        $region21: #{graphsage_forward.7} parent=12 // pred_fallthru
          _
      $region13: #{graphsage_forward.7} parent=8 // pred_fallthru
        _
      %111 = vnop
    $region9: #{graphsage_forward.7} parent=1 // pred_fallthru
      _
    // Predicated region
    $region47: #{graphsage_forward.7} parent=1 // pred_check
      _
    $region48: #{graphsage_forward.7} parent=1 // pred_check_branch
      %113 = sbr.rel (0) target = $region50
    $region49: #{graphsage_forward.7} parent=1 // pred_region
      %s114 = scalar_lea.vmem %s2, 4
      // Predicated region
      $region51: #{graphsage_forward.7} parent=49 // pred_check
        _
      $region52: #{graphsage_forward.7} parent=49 // pred_check_branch
        %116 = sbr.rel (0) target = $region54
      $region53: #{graphsage_forward.7} parent=49 // pred_region
        // Predicated region
        $region55: #{graphsage_forward.7} parent=53 // pred_check
          _
        $region56: #{graphsage_forward.7} parent=53 // pred_check_branch
          %118 = sbr.rel target = $region58
        $region57: #{graphsage_forward.7} parent=53 // pred_region
          // Predicated region
          $region70: #{graphsage_forward.7} parent=57 // pred_check
            _
          $region71: #{graphsage_forward.7} parent=57 // pred_check_branch
            %163 = sbr.rel (0) target = $region73
          $region72: #{graphsage_forward.7} parent=57 // pred_region
            loop: start=0, step=1, limit=1
            $region74: #{graphsage_forward.7} parent=72 // loop_pre_header
              _
            $region75: #{graphsage_forward.7} parent=72 // loop_header
              %s165 = sphi 0, %s169
              %p166 = scmp.ge.s32.totalorder %s165, 1
              %s170 = sphi %s114, %s114
              %s171 = sphi [#allocation4], [#allocation4]
            $region76: #{graphsage_forward.7} parent=72 // loop_header_branch
              %168 = sbr.rel (%p166) target = $region80
            $region77: #{graphsage_forward.7} parent=72 // loop_body
              _
            $region78: #{graphsage_forward.7} parent=72 // loop_footer
              %s169 = sadd.s32 1, %s165
            $region79: #{graphsage_forward.7} parent=72 // loop_footer_branch
              %164 = sbr.rel target = $region75
            $region80: #{graphsage_forward.7} parent=72 // loop_exit
              _
            loop: start=0, step=1, limit=1
            $region81: #{graphsage_forward.7} parent=72 // loop_pre_header
              _
            $region82: #{graphsage_forward.7} parent=72 // loop_header
              %s174 = sphi 0, %s178
              %p175 = scmp.ge.s32.totalorder %s174, 1
              %s179 = sphi %s114, %s114
              %s180 = sphi [#allocation4], [#allocation4]
            $region83: #{graphsage_forward.7} parent=72 // loop_header_branch
              %177 = sbr.rel (%p175) target = $region87
            $region84: #{graphsage_forward.7} parent=72 // loop_body
              %v181 = vld [vmem:[%s179] sm:$0xf]
              %182 = vst [vmem:[%s180] sm:$0xf] %v181
              %v183 = vld [vmem:[%s179 + $0x8] sm:$0xf]
              %184 = vst [vmem:[%s180 + $0x4] sm:$0xf] %v183
              %v185 = vld [vmem:[%s179 + $0x10] sm:$0xf]
              %186 = vst [vmem:[%s180 + $0x8] sm:$0xf] %v185
              %v187 = vld [vmem:[%s179 + $0x18] sm:$0xf]
              %188 = vst [vmem:[%s180 + $0xc] sm:$0xf] %v187
              %v189 = vld [vmem:[%s179 + $0x20] sm:$0xf]
              %190 = vst [vmem:[%s180 + $0x10] sm:$0xf] %v189
              %v191 = vld [vmem:[%s179 + $0x28] sm:$0xf]
              %192 = vst [vmem:[%s180 + $0x14] sm:$0xf] %v191
              %v193 = vld [vmem:[%s179 + $0x30] sm:$0xf]
              %194 = vst [vmem:[%s180 + $0x18] sm:$0xf] %v193
              %v195 = vld [vmem:[%s179 + $0x38] sm:$0xf]
              %196 = vst [vmem:[%s180 + $0x1c] sm:$0xf] %v195
              %v197 = vld [vmem:[%s179 + $0x40] sm:$0xf]
              %198 = vst [vmem:[%s180 + $0x20] sm:$0xf] %v197
              %v199 = vld [vmem:[%s179 + $0x48] sm:$0xf]
              %200 = vst [vmem:[%s180 + $0x24] sm:$0xf] %v199
              %v201 = vld [vmem:[%s179 + $0x50] sm:$0xf]
              %202 = vst [vmem:[%s180 + $0x28] sm:$0xf] %v201
              %v203 = vld [vmem:[%s179 + $0x58] sm:$0xf]
              %204 = vst [vmem:[%s180 + $0x2c] sm:$0xf] %v203
              %v205 = vld [vmem:[%s179 + $0x60] sm:$0xf]
              %206 = vst [vmem:[%s180 + $0x30] sm:$0xf] %v205
              %v207 = vld [vmem:[%s179 + $0x68] sm:$0xf]
              %208 = vst [vmem:[%s180 + $0x34] sm:$0xf] %v207
              %v209 = vld [vmem:[%s179 + $0x70] sm:$0xf]
              %210 = vst [vmem:[%s180 + $0x38] sm:$0xf] %v209
              %v211 = vld [vmem:[%s179 + $0x78] sm:$0xf]
              %212 = vst [vmem:[%s180 + $0x3c] sm:$0xf] %v211
            $region85: #{graphsage_forward.7} parent=72 // loop_footer
              %s178 = sadd.s32 1, %s174
            $region86: #{graphsage_forward.7} parent=72 // loop_footer_branch
              %173 = sbr.rel target = $region82
            $region87: #{graphsage_forward.7} parent=72 // loop_exit
              _
          $region73: #{graphsage_forward.7} parent=57 // pred_fallthru
            _
        $region58: #{graphsage_forward.7} parent=53 // pred_fallthru
          _
        // Predicated region
        $region59: #{graphsage_forward.7} parent=53 // pred_check
          _
        $region60: #{graphsage_forward.7} parent=53 // pred_check_branch
          %120 = sbr.rel (0) target = $region62
        $region61: #{graphsage_forward.7} parent=53 // pred_region
          loop: start=0, step=1, limit=1
          $region63: #{graphsage_forward.7} parent=61 // loop_pre_header
            _
          $region64: #{graphsage_forward.7} parent=61 // loop_header
            %s123 = sphi 0, %s127
            %p124 = scmp.ge.s32.totalorder %s123, 1
            %s128 = sphi %s114, %s114
            %s129 = sphi [#allocation4], [#allocation4]
          $region65: #{graphsage_forward.7} parent=61 // loop_header_branch
            %126 = sbr.rel (%p124) target = $region69
          $region66: #{graphsage_forward.7} parent=61 // loop_body
            %v130 = vld [vmem:[%s128] sm:$0xf]
            %131 = vst [vmem:[%s129] sm:$0xf] %v130
            %v132 = vld [vmem:[%s128 + $0x8] sm:$0xf]
            %133 = vst [vmem:[%s129 + $0x4] sm:$0xf] %v132
            %v134 = vld [vmem:[%s128 + $0x10] sm:$0xf]
            %135 = vst [vmem:[%s129 + $0x8] sm:$0xf] %v134
            %v136 = vld [vmem:[%s128 + $0x18] sm:$0xf]
            %137 = vst [vmem:[%s129 + $0xc] sm:$0xf] %v136
            %v138 = vld [vmem:[%s128 + $0x20] sm:$0xf]
            %139 = vst [vmem:[%s129 + $0x10] sm:$0xf] %v138
            %v140 = vld [vmem:[%s128 + $0x28] sm:$0xf]
            %141 = vst [vmem:[%s129 + $0x14] sm:$0xf] %v140
            %v142 = vld [vmem:[%s128 + $0x30] sm:$0xf]
            %143 = vst [vmem:[%s129 + $0x18] sm:$0xf] %v142
            %v144 = vld [vmem:[%s128 + $0x38] sm:$0xf]
            %145 = vst [vmem:[%s129 + $0x1c] sm:$0xf] %v144
            %v146 = vld [vmem:[%s128 + $0x40] sm:$0xf]
            %147 = vst [vmem:[%s129 + $0x20] sm:$0xf] %v146
            %v148 = vld [vmem:[%s128 + $0x48] sm:$0xf]
            %149 = vst [vmem:[%s129 + $0x24] sm:$0xf] %v148
            %v150 = vld [vmem:[%s128 + $0x50] sm:$0xf]
            %151 = vst [vmem:[%s129 + $0x28] sm:$0xf] %v150
            %v152 = vld [vmem:[%s128 + $0x58] sm:$0xf]
            %153 = vst [vmem:[%s129 + $0x2c] sm:$0xf] %v152
            %v154 = vld [vmem:[%s128 + $0x60] sm:$0xf]
            %155 = vst [vmem:[%s129 + $0x30] sm:$0xf] %v154
            %v156 = vld [vmem:[%s128 + $0x68] sm:$0xf]
            %157 = vst [vmem:[%s129 + $0x34] sm:$0xf] %v156
            %v158 = vld [vmem:[%s128 + $0x70] sm:$0xf]
            %159 = vst [vmem:[%s129 + $0x38] sm:$0xf] %v158
            %v160 = vld [vmem:[%s128 + $0x78] sm:$0xf]
            %161 = vst [vmem:[%s129 + $0x3c] sm:$0xf] %v160
          $region67: #{graphsage_forward.7} parent=61 // loop_footer
            %s127 = sadd.s32 1, %s123
          $region68: #{graphsage_forward.7} parent=61 // loop_footer_branch
            %122 = sbr.rel target = $region64
          $region69: #{graphsage_forward.7} parent=61 // loop_exit
            _
        $region62: #{graphsage_forward.7} parent=53 // pred_fallthru
          _
      $region54: #{graphsage_forward.7} parent=49 // pred_fallthru
        _
      %213 = vnop
    $region50: #{graphsage_forward.7} parent=1 // pred_fallthru
      _
    // Predicated region
    $region88: #{graphsage_forward.7} parent=1 // pred_check
      _
    $region89: #{graphsage_forward.7} parent=1 // pred_check_branch
      %215 = sbr.rel (0) target = $region91
    $region90: #{graphsage_forward.7} parent=1 // pred_region
      _
    $region91: #{graphsage_forward.7} parent=1 // pred_fallthru
      _
    // Predicated region
    $region92: #{graphsage_forward.7} parent=1 // pred_check
      _
    $region93: #{graphsage_forward.7} parent=1 // pred_check_branch
      %217 = sbr.rel (0) target = $region95
    $region94: #{graphsage_forward.7} parent=1 // pred_region
      _
    $region95: #{graphsage_forward.7} parent=1 // pred_fallthru
      _
    // Predicated region
    $region96: #{graphsage_forward.7} parent=1 // pred_check
      _
    $region97: #{graphsage_forward.7} parent=1 // pred_check_branch
      %219 = sbr.rel (0) target = $region99
    $region98: #{graphsage_forward.7} parent=1 // pred_region
      _
    $region99: #{graphsage_forward.7} parent=1 // pred_fallthru
      _
    %p221 = scmp.eq.s32.totalorder 0, 0
    // Predicated region
    $region100: #{graphsage_forward.7} parent=1 // pred_check
      %p222 = pneg %p221
    $region101: #{graphsage_forward.7} parent=1 // pred_check_branch
      %224 = sbr.rel (%p222) target = $region103
    $region102: #{graphsage_forward.7} parent=1 // pred_region
      %225 = vst [vmem:[#allocation2] sm:$0xff] 0.0
      %226 = vst [vmem:[#allocation2 + $0x8] sm:$0xff] 0.0
      %227 = vst [vmem:[#allocation2 + $0x10] sm:$0xff] 0.0
      %228 = vst [vmem:[#allocation2 + $0x18] sm:$0xff] 0.0
      %229 = vst [vmem:[#allocation2 + $0x20] sm:$0xff] 0.0
      %230 = vst [vmem:[#allocation2 + $0x28] sm:$0xff] 0.0
      %231 = vst [vmem:[#allocation2 + $0x30] sm:$0xff] 0.0
      %232 = vst [vmem:[#allocation2 + $0x38] sm:$0xff] 0.0
      %233 = vst [vmem:[#allocation2 + $0x40] sm:$0xff] 0.0
      %234 = vst [vmem:[#allocation2 + $0x48] sm:$0xff] 0.0
      %235 = vst [vmem:[#allocation2 + $0x50] sm:$0xff] 0.0
      %236 = vst [vmem:[#allocation2 + $0x58] sm:$0xff] 0.0
      %237 = vst [vmem:[#allocation2 + $0x60] sm:$0xff] 0.0
      %238 = vst [vmem:[#allocation2 + $0x68] sm:$0xff] 0.0
      %239 = vst [vmem:[#allocation2 + $0x70] sm:$0xff] 0.0
      %240 = vst [vmem:[#allocation2 + $0x78] sm:$0xff] 0.0
    $region103: #{graphsage_forward.7} parent=1 // pred_fallthru
      _
    %v241 = vld [vmem:[#allocation2] sm:$0xff]
    %v242 = vld [vmem:[#allocation2 + $0x8] sm:$0xff]
    %v243 = vld [vmem:[#allocation2 + $0x10] sm:$0xff]
    %v244 = vld [vmem:[#allocation2 + $0x18] sm:$0xff]
    %v245 = vld [vmem:[#allocation2 + $0x20] sm:$0xff]
    %v246 = vld [vmem:[#allocation2 + $0x28] sm:$0xff]
    %v247 = vld [vmem:[#allocation2 + $0x30] sm:$0xff]
    %v248 = vld [vmem:[#allocation2 + $0x38] sm:$0xff]
    %v249 = vld [vmem:[#allocation2 + $0x40] sm:$0xff]
    %v250 = vld [vmem:[#allocation2 + $0x48] sm:$0xff]
    %v251 = vld [vmem:[#allocation2 + $0x50] sm:$0xff]
    %v252 = vld [vmem:[#allocation2 + $0x58] sm:$0xff]
    %v253 = vld [vmem:[#allocation2 + $0x60] sm:$0xff]
    %v254 = vld [vmem:[#allocation2 + $0x68] sm:$0xff]
    %v255 = vld [vmem:[#allocation2 + $0x70] sm:$0xff]
    %v256 = vld [vmem:[#allocation2 + $0x78] sm:$0xff]
    %v257 = vld [vmem:[%s0] sm:$0xf]
    %v258 = vld [vmem:[%s0 + $0x4] sm:$0xf]
    %v259 = vld [vmem:[%s0 + $0x8] sm:$0xf]
    %v260 = vld [vmem:[%s0 + $0xc] sm:$0xf]
    %v261 = vld [vmem:[%s0 + $0x10] sm:$0xf]
    %v262 = vld [vmem:[%s0 + $0x14] sm:$0xf]
    %v263 = vld [vmem:[%s0 + $0x18] sm:$0xf]
    %v264 = vld [vmem:[%s0 + $0x1c] sm:$0xf]
    %v265 = vld [vmem:[%s0 + $0x20] sm:$0xf]
    %v266 = vld [vmem:[%s0 + $0x24] sm:$0xf]
    %v267 = vld [vmem:[%s0 + $0x28] sm:$0xf]
    %v268 = vld [vmem:[%s0 + $0x2c] sm:$0xf]
    %v269 = vld [vmem:[%s0 + $0x30] sm:$0xf]
    %v270 = vld [vmem:[%s0 + $0x34] sm:$0xf]
    %v271 = vld [vmem:[%s0 + $0x38] sm:$0xf]
    %v272 = vld [vmem:[%s0 + $0x3c] sm:$0xf]
    %v273 = vld [vmem:[#allocation3] sm:$0xf]
    %v274 = vld [vmem:[#allocation3 + $0x4] sm:$0xf]
    %v275 = vld [vmem:[#allocation3 + $0x8] sm:$0xf]
    %v276 = vld [vmem:[#allocation3 + $0xc] sm:$0xf]
    %v277 = vld [vmem:[#allocation3 + $0x10] sm:$0xf]
    %v278 = vld [vmem:[#allocation3 + $0x14] sm:$0xf]
    %v279 = vld [vmem:[#allocation3 + $0x18] sm:$0xf]
    %v280 = vld [vmem:[#allocation3 + $0x1c] sm:$0xf]
    %v281 = vld [vmem:[#allocation3 + $0x20] sm:$0xf]
    %v282 = vld [vmem:[#allocation3 + $0x24] sm:$0xf]
    %v283 = vld [vmem:[#allocation3 + $0x28] sm:$0xf]
    %v284 = vld [vmem:[#allocation3 + $0x2c] sm:$0xf]
    %v285 = vld [vmem:[#allocation3 + $0x30] sm:$0xf]
    %v286 = vld [vmem:[#allocation3 + $0x34] sm:$0xf]
    %v287 = vld [vmem:[#allocation3 + $0x38] sm:$0xf]
    %v288 = vld [vmem:[#allocation3 + $0x3c] sm:$0xf]
    %v305 = vunpack.c.l.b16 %v257
    %v306 = vunpack.c.l.b16 %v258
    %v307 = vunpack.c.l.b16 %v259
    %v308 = vunpack.c.l.b16 %v260
    %v309 = vunpack.c.l.b16 %v261
    %v310 = vunpack.c.l.b16 %v262
    %v311 = vunpack.c.l.b16 %v263
    %v312 = vunpack.c.l.b16 %v264
    %v313 = vunpack.c.l.b16 %v265
    %v314 = vunpack.c.l.b16 %v266
    %v315 = vunpack.c.l.b16 %v267
    %v316 = vunpack.c.l.b16 %v268
    %v317 = vunpack.c.l.b16 %v269
    %v318 = vunpack.c.l.b16 %v270
    %v319 = vunpack.c.l.b16 %v271
    %v320 = vunpack.c.l.b16 %v272
    %v321 = vpack.c.b16 %v306, %v305
    %v322 = vpack.c.b16 %v308, %v307
    %v323 = vpack.c.b16 %v310, %v309
    %v324 = vpack.c.b16 %v312, %v311
    %v325 = vpack.c.b16 %v314, %v313
    %v326 = vpack.c.b16 %v316, %v315
    %v327 = vpack.c.b16 %v318, %v317
    %v328 = vpack.c.b16 %v320, %v319
    %v353 = vunpack.c.l.b16 %v273
    %v354 = vunpack.c.l.b16 %v274
    %v355 = vunpack.c.l.b16 %v275
    %v356 = vunpack.c.l.b16 %v276
    %v357 = vunpack.c.l.b16 %v277
    %v358 = vunpack.c.l.b16 %v278
    %v359 = vunpack.c.l.b16 %v279
    %v360 = vunpack.c.l.b16 %v280
    %v361 = vunpack.c.l.b16 %v281
    %v362 = vunpack.c.l.b16 %v282
    %v363 = vunpack.c.l.b16 %v283
    %v364 = vunpack.c.l.b16 %v284
    %v365 = vunpack.c.l.b16 %v285
    %v366 = vunpack.c.l.b16 %v286
    %v367 = vunpack.c.l.b16 %v287
    %v368 = vunpack.c.l.b16 %v288
    %v369 = vpack.c.b16 %v354, %v353
    %v370 = vpack.c.b16 %v356, %v355
    %v371 = vpack.c.b16 %v358, %v357
    %v372 = vpack.c.b16 %v360, %v359
    %v373 = vpack.c.b16 %v362, %v361
    %v374 = vpack.c.b16 %v364, %v363
    %v375 = vpack.c.b16 %v366, %v365
    %v376 = vpack.c.b16 %v368, %v367
    %385 = vmatprep.subr.bf16.mxu0 0
    %386 = vmatpush1.bf16.msra.mxu0 %v369
    %387 = vmatprep.subr.bf16.mxu0 0
    %388 = vmatpush1.bf16.msra.mxu0 %v370
    %389 = vmatprep.subr.bf16.mxu0 0
    %390 = vmatpush1.bf16.msra.mxu0 %v371
    %391 = vmatprep.subr.bf16.mxu0 0
    %392 = vmatpush1.bf16.msra.mxu0 %v372
    %393 = vmatprep.subr.bf16.mxu0 0
    %394 = vmatpush1.bf16.msra.mxu0 %v373
    %395 = vmatprep.subr.bf16.mxu0 0
    %396 = vmatpush1.bf16.msra.mxu0 %v374
    %397 = vmatprep.subr.bf16.mxu0 0
    %398 = vmatpush1.bf16.msra.mxu0 %v375
    %399 = vmatprep.subr.bf16.mxu0 0
    %400 = vmatpush1.bf16.msra.mxu0 %v376
    %401 = vmatprep.subr.bf16.mxu0 0
    %402 = vmatpush1.bf16.msra.mxu0 0
    %403 = vmatprep.subr.bf16.mxu0 0
    %404 = vmatpush1.bf16.msra.mxu0 0
    %405 = vmatprep.subr.bf16.mxu0 0
    %406 = vmatpush1.bf16.msra.mxu0 0
    %407 = vmatprep.subr.bf16.mxu0 0
    %408 = vmatpush1.bf16.msra.mxu0 0
    %409 = vmatprep.subr.bf16.mxu0 0
    %410 = vmatpush1.bf16.msra.mxu0 0
    %411 = vmatprep.subr.bf16.mxu0 0
    %412 = vmatpush1.bf16.msra.mxu0 0
    %413 = vmatprep.subr.bf16.mxu0 0
    %414 = vmatpush1.bf16.msra.mxu0 0
    %415 = vmatprep.subr.bf16.mxu0 0
    %416 = vmatpush1.bf16.msra.mxu0 0
    %417 = vmatprep.mubr.bf16.mxu0 0
    %418 = vmatmul.mubr.bf16.gmra.mrb[0].mxu0 %v321
    %v419 = vpop.f32.mrb[0].mxu0
    %v420 = vadd.f32 0.0, %v419
    %v421 = vpop.f32.mrb[0].mxu0
    %v422 = vpop.f32.mrb[0].mxu0
    %v423 = vadd.f32 0.0, %v422
    %v424 = vpop.f32.mrb[0].mxu0
    %425 = vmatprep.mubr.bf16.mxu0 0
    %426 = vmatmul.mubr.bf16.gmra.mrb[0].mxu0 %v322
    %v427 = vpop.f32.mrb[0].mxu0
    %v428 = vadd.f32 0.0, %v427
    %v429 = vpop.f32.mrb[0].mxu0
    %v430 = vpop.f32.mrb[0].mxu0
    %v431 = vadd.f32 0.0, %v430
    %v432 = vpop.f32.mrb[0].mxu0
    %433 = vmatprep.mubr.bf16.mxu0 0
    %434 = vmatmul.mubr.bf16.gmra.mrb[0].mxu0 %v323
    %v435 = vpop.f32.mrb[0].mxu0
    %v436 = vadd.f32 0.0, %v435
    %v437 = vpop.f32.mrb[0].mxu0
    %v438 = vpop.f32.mrb[0].mxu0
    %v439 = vadd.f32 0.0, %v438
    %v440 = vpop.f32.mrb[0].mxu0
    %441 = vmatprep.mubr.bf16.mxu0 0
    %442 = vmatmul.mubr.bf16.gmra.mrb[0].mxu0 %v324
    %v443 = vpop.f32.mrb[0].mxu0
    %v444 = vadd.f32 0.0, %v443
    %v445 = vpop.f32.mrb[0].mxu0
    %v446 = vpop.f32.mrb[0].mxu0
    %v447 = vadd.f32 0.0, %v446
    %v448 = vpop.f32.mrb[0].mxu0
    %449 = vmatprep.mubr.bf16.mxu0 0
    %450 = vmatmul.mubr.bf16.gmra.mrb[0].mxu0 %v325
    %v451 = vpop.f32.mrb[0].mxu0
    %v452 = vadd.f32 0.0, %v451
    %v453 = vpop.f32.mrb[0].mxu0
    %v454 = vpop.f32.mrb[0].mxu0
    %v455 = vadd.f32 0.0, %v454
    %v456 = vpop.f32.mrb[0].mxu0
    %457 = vmatprep.mubr.bf16.mxu0 0
    %458 = vmatmul.mubr.bf16.gmra.mrb[0].mxu0 %v326
    %v459 = vpop.f32.mrb[0].mxu0
    %v460 = vadd.f32 0.0, %v459
    %v461 = vpop.f32.mrb[0].mxu0
    %v462 = vpop.f32.mrb[0].mxu0
    %v463 = vadd.f32 0.0, %v462
    %v464 = vpop.f32.mrb[0].mxu0
    %465 = vmatprep.mubr.bf16.mxu0 0
    %466 = vmatmul.mubr.bf16.gmra.mrb[0].mxu0 %v327
    %v467 = vpop.f32.mrb[0].mxu0
    %v468 = vadd.f32 0.0, %v467
    %v469 = vpop.f32.mrb[0].mxu0
    %v470 = vpop.f32.mrb[0].mxu0
    %v471 = vadd.f32 0.0, %v470
    %v472 = vpop.f32.mrb[0].mxu0
    %473 = vmatprep.mubr.bf16.mxu0 0
    %474 = vmatmul.mubr.bf16.gmra.mrb[0].mxu0 %v328
    %v475 = vpop.f32.mrb[0].mxu0
    %v476 = vadd.f32 0.0, %v475
    %v477 = vpop.f32.mrb[0].mxu0
    %v478 = vpop.f32.mrb[0].mxu0
    %v479 = vadd.f32 0.0, %v478
    %v480 = vpop.f32.mrb[0].mxu0
    %481 = vdwg.mxu0
    %v482 = vadd.f32 %v241, %v420
    %v483 = vadd.f32 %v242, %v423
    %v484 = vadd.f32 %v243, %v428
    %v485 = vadd.f32 %v244, %v431
    %v486 = vadd.f32 %v245, %v436
    %v487 = vadd.f32 %v246, %v439
    %v488 = vadd.f32 %v247, %v444
    %v489 = vadd.f32 %v248, %v447
    %v490 = vadd.f32 %v249, %v452
    %v491 = vadd.f32 %v250, %v455
    %v492 = vadd.f32 %v251, %v460
    %v493 = vadd.f32 %v252, %v463
    %v494 = vadd.f32 %v253, %v468
    %v495 = vadd.f32 %v254, %v471
    %v496 = vadd.f32 %v255, %v476
    %v497 = vadd.f32 %v256, %v479
    %498 = vst [vmem:[#allocation2] sm:$0xff] %v482
    %499 = vst [vmem:[#allocation2 + $0x8] sm:$0xff] %v483
    %500 = vst [vmem:[#allocation2 + $0x10] sm:$0xff] %v484
    %501 = vst [vmem:[#allocation2 + $0x18] sm:$0xff] %v485
    %502 = vst [vmem:[#allocation2 + $0x20] sm:$0xff] %v486
    %503 = vst [vmem:[#allocation2 + $0x28] sm:$0xff] %v487
    %504 = vst [vmem:[#allocation2 + $0x30] sm:$0xff] %v488
    %505 = vst [vmem:[#allocation2 + $0x38] sm:$0xff] %v489
    %506 = vst [vmem:[#allocation2 + $0x40] sm:$0xff] %v490
    %507 = vst [vmem:[#allocation2 + $0x48] sm:$0xff] %v491
    %508 = vst [vmem:[#allocation2 + $0x50] sm:$0xff] %v492
    %509 = vst [vmem:[#allocation2 + $0x58] sm:$0xff] %v493
    %510 = vst [vmem:[#allocation2 + $0x60] sm:$0xff] %v494
    %511 = vst [vmem:[#allocation2 + $0x68] sm:$0xff] %v495
    %512 = vst [vmem:[#allocation2 + $0x70] sm:$0xff] %v496
    %513 = vst [vmem:[#allocation2 + $0x78] sm:$0xff] %v497
    // Predicated region
    $region104: #{graphsage_forward.7} parent=1 // pred_check
      %p514 = pneg %p221
    $region105: #{graphsage_forward.7} parent=1 // pred_check_branch
      %516 = sbr.rel (%p514) target = $region107
    $region106: #{graphsage_forward.7} parent=1 // pred_region
      %v517 = vld [vmem:[#allocation2] sm:$0xff]
      %v518 = vld [vmem:[#allocation2 + $0x8] sm:$0xff]
      %v519 = vld [vmem:[#allocation2 + $0x10] sm:$0xff]
      %v520 = vld [vmem:[#allocation2 + $0x18] sm:$0xff]
      %v521 = vld [vmem:[#allocation2 + $0x20] sm:$0xff]
      %v522 = vld [vmem:[#allocation2 + $0x28] sm:$0xff]
      %v523 = vld [vmem:[#allocation2 + $0x30] sm:$0xff]
      %v524 = vld [vmem:[#allocation2 + $0x38] sm:$0xff]
      %v525 = vld [vmem:[#allocation2 + $0x40] sm:$0xff]
      %v526 = vld [vmem:[#allocation2 + $0x48] sm:$0xff]
      %v527 = vld [vmem:[#allocation2 + $0x50] sm:$0xff]
      %v528 = vld [vmem:[#allocation2 + $0x58] sm:$0xff]
      %v529 = vld [vmem:[#allocation2 + $0x60] sm:$0xff]
      %v530 = vld [vmem:[#allocation2 + $0x68] sm:$0xff]
      %v531 = vld [vmem:[#allocation2 + $0x70] sm:$0xff]
      %v532 = vld [vmem:[#allocation2 + $0x78] sm:$0xff]
      %v533 = vld [vmem:[%s3] sm:$0xff]
      %v534 = vld [vmem:[%s3 + $0x8] sm:$0xff]
      %v535 = vld [vmem:[%s3 + $0x10] sm:$0xff]
      %v536 = vld [vmem:[%s3 + $0x18] sm:$0xff]
      %v537 = vld [vmem:[%s3 + $0x20] sm:$0xff]
      %v538 = vld [vmem:[%s3 + $0x28] sm:$0xff]
      %v539 = vld [vmem:[%s3 + $0x30] sm:$0xff]
      %v540 = vld [vmem:[%s3 + $0x38] sm:$0xff]
      %v541 = vld [vmem:[%s3 + $0x40] sm:$0xff]
      %v542 = vld [vmem:[%s3 + $0x48] sm:$0xff]
      %v543 = vld [vmem:[%s3 + $0x50] sm:$0xff]
      %v544 = vld [vmem:[%s3 + $0x58] sm:$0xff]
      %v545 = vld [vmem:[%s3 + $0x60] sm:$0xff]
      %v546 = vld [vmem:[%s3 + $0x68] sm:$0xff]
      %v547 = vld [vmem:[%s3 + $0x70] sm:$0xff]
      %v548 = vld [vmem:[%s3 + $0x78] sm:$0xff]
      %550 = vset.pattern.permute.xlu0 0
      %551 = vperm.xlu0 %550, %v533
      %v552 = vpop.permute.xlu0 %551
      %555 = vset.pattern.permute.xlu0 0
      %556 = vperm.xlu0 %555, %v534
      %v557 = vpop.permute.xlu0 %556
      %560 = vset.pattern.permute.xlu0 0
      %561 = vperm.xlu0 %560, %v535
      %v562 = vpop.permute.xlu0 %561
      %565 = vset.pattern.permute.xlu0 0
      %566 = vperm.xlu0 %565, %v536
      %v567 = vpop.permute.xlu0 %566
      %570 = vset.pattern.permute.xlu0 0
      %571 = vperm.xlu0 %570, %v537
      %v572 = vpop.permute.xlu0 %571
      %575 = vset.pattern.permute.xlu0 0
      %576 = vperm.xlu0 %575, %v538
      %v577 = vpop.permute.xlu0 %576
      %580 = vset.pattern.permute.xlu0 0
      %581 = vperm.xlu0 %580, %v539
      %v582 = vpop.permute.xlu0 %581
      %585 = vset.pattern.permute.xlu0 0
      %586 = vperm.xlu0 %585, %v540
      %v587 = vpop.permute.xlu0 %586
      %590 = vset.pattern.permute.xlu0 0
      %591 = vperm.xlu0 %590, %v541
      %v592 = vpop.permute.xlu0 %591
      %595 = vset.pattern.permute.xlu0 0
      %596 = vperm.xlu0 %595, %v542
      %v597 = vpop.permute.xlu0 %596
      %600 = vset.pattern.permute.xlu0 0
      %601 = vperm.xlu0 %600, %v543
      %v602 = vpop.permute.xlu0 %601
      %605 = vset.pattern.permute.xlu0 0
      %606 = vperm.xlu0 %605, %v544
      %v607 = vpop.permute.xlu0 %606
      %610 = vset.pattern.permute.xlu0 0
      %611 = vperm.xlu0 %610, %v545
      %v612 = vpop.permute.xlu0 %611
      %615 = vset.pattern.permute.xlu0 0
      %616 = vperm.xlu0 %615, %v546
      %v617 = vpop.permute.xlu0 %616
      %620 = vset.pattern.permute.xlu0 0
      %621 = vperm.xlu0 %620, %v547
      %v622 = vpop.permute.xlu0 %621
      %625 = vset.pattern.permute.xlu0 0
      %626 = vperm.xlu0 %625, %v548
      %v627 = vpop.permute.xlu0 %626
      %v629 = vmul.f32 %v517, %v552
      %v630 = vmul.f32 %v518, %v557
      %v631 = vmul.f32 %v519, %v562
      %v632 = vmul.f32 %v520, %v567
      %v633 = vmul.f32 %v521, %v572
      %v634 = vmul.f32 %v522, %v577
      %v635 = vmul.f32 %v523, %v582
      %v636 = vmul.f32 %v524, %v587
      %v637 = vmul.f32 %v525, %v592
      %v638 = vmul.f32 %v526, %v597
      %v639 = vmul.f32 %v527, %v602
      %v640 = vmul.f32 %v528, %v607
      %v641 = vmul.f32 %v529, %v612
      %v642 = vmul.f32 %v530, %v617
      %v643 = vmul.f32 %v531, %v622
      %v644 = vmul.f32 %v532, %v627
      %v645 = vld [vmem:[#allocation4] sm:$0xf]
      %v646 = vld [vmem:[#allocation4 + $0x4] sm:$0xf]
      %v647 = vld [vmem:[#allocation4 + $0x8] sm:$0xf]
      %v648 = vld [vmem:[#allocation4 + $0xc] sm:$0xf]
      %v649 = vld [vmem:[#allocation4 + $0x10] sm:$0xf]
      %v650 = vld [vmem:[#allocation4 + $0x14] sm:$0xf]
      %v651 = vld [vmem:[#allocation4 + $0x18] sm:$0xf]
      %v652 = vld [vmem:[#allocation4 + $0x1c] sm:$0xf]
      %v653 = vld [vmem:[#allocation4 + $0x20] sm:$0xf]
      %v654 = vld [vmem:[#allocation4 + $0x24] sm:$0xf]
      %v655 = vld [vmem:[#allocation4 + $0x28] sm:$0xf]
      %v656 = vld [vmem:[#allocation4 + $0x2c] sm:$0xf]
      %v657 = vld [vmem:[#allocation4 + $0x30] sm:$0xf]
      %v658 = vld [vmem:[#allocation4 + $0x34] sm:$0xf]
      %v659 = vld [vmem:[#allocation4 + $0x38] sm:$0xf]
      %v660 = vld [vmem:[#allocation4 + $0x3c] sm:$0xf]
      %v661 = vunpack.c.l.bf16 %v645
      %v662 = vunpack.c.l.bf16 %v646
      %v663 = vunpack.c.l.bf16 %v647
      %v664 = vunpack.c.l.bf16 %v648
      %v665 = vunpack.c.l.bf16 %v649
      %v666 = vunpack.c.l.bf16 %v650
      %v667 = vunpack.c.l.bf16 %v651
      %v668 = vunpack.c.l.bf16 %v652
      %v669 = vunpack.c.l.bf16 %v653
      %v670 = vunpack.c.l.bf16 %v654
      %v671 = vunpack.c.l.bf16 %v655
      %v672 = vunpack.c.l.bf16 %v656
      %v673 = vunpack.c.l.bf16 %v657
      %v674 = vunpack.c.l.bf16 %v658
      %v675 = vunpack.c.l.bf16 %v659
      %v676 = vunpack.c.l.bf16 %v660
      %v677 = vadd.f32 %v629, %v661
      %v678 = vadd.f32 %v630, %v662
      %v679 = vadd.f32 %v631, %v663
      %v680 = vadd.f32 %v632, %v664
      %v681 = vadd.f32 %v633, %v665
      %v682 = vadd.f32 %v634, %v666
      %v683 = vadd.f32 %v635, %v667
      %v684 = vadd.f32 %v636, %v668
      %v685 = vadd.f32 %v637, %v669
      %v686 = vadd.f32 %v638, %v670
      %v687 = vadd.f32 %v639, %v671
      %v688 = vadd.f32 %v640, %v672
      %v689 = vadd.f32 %v641, %v673
      %v690 = vadd.f32 %v642, %v674
      %v691 = vadd.f32 %v643, %v675
      %v692 = vadd.f32 %v644, %v676
      %v693 = vlaneseq
      %v694 = vand.u32 %v693, 127
      %vm695 = vcmp.lt.s32.totalorder %v694, 16
      %v696 = vsel %vm695, %v677, -1e+30
      %v697 = vsel %vm695, %v678, -1e+30
      %v698 = vsel %vm695, %v679, -1e+30
      %v699 = vsel %vm695, %v680, -1e+30
      %v700 = vsel %vm695, %v681, -1e+30
      %v701 = vsel %vm695, %v682, -1e+30
      %v702 = vsel %vm695, %v683, -1e+30
      %v703 = vsel %vm695, %v684, -1e+30
      %v704 = vsel %vm695, %v685, -1e+30
      %v705 = vsel %vm695, %v686, -1e+30
      %v706 = vsel %vm695, %v687, -1e+30
      %v707 = vsel %vm695, %v688, -1e+30
      %v708 = vsel %vm695, %v689, -1e+30
      %v709 = vsel %vm695, %v690, -1e+30
      %v710 = vsel %vm695, %v691, -1e+30
      %v711 = vsel %vm695, %v692, -1e+30
      %712 = vmax.xlane.f32.xlu0 %v696
      %v713 = vpop.xlane.xlu0 %712
      %714 = vmax.xlane.f32.xlu0 %v697
      %v715 = vpop.xlane.xlu0 %714
      %716 = vmax.xlane.f32.xlu0 %v698
      %v717 = vpop.xlane.xlu0 %716
      %718 = vmax.xlane.f32.xlu0 %v699
      %v719 = vpop.xlane.xlu0 %718
      %720 = vmax.xlane.f32.xlu0 %v700
      %v721 = vpop.xlane.xlu0 %720
      %722 = vmax.xlane.f32.xlu0 %v701
      %v723 = vpop.xlane.xlu0 %722
      %724 = vmax.xlane.f32.xlu0 %v702
      %v725 = vpop.xlane.xlu0 %724
      %726 = vmax.xlane.f32.xlu0 %v703
      %v727 = vpop.xlane.xlu0 %726
      %728 = vmax.xlane.f32.xlu0 %v704
      %v729 = vpop.xlane.xlu0 %728
      %730 = vmax.xlane.f32.xlu0 %v705
      %v731 = vpop.xlane.xlu0 %730
      %732 = vmax.xlane.f32.xlu0 %v706
      %v733 = vpop.xlane.xlu0 %732
      %734 = vmax.xlane.f32.xlu0 %v707
      %v735 = vpop.xlane.xlu0 %734
      %736 = vmax.xlane.f32.xlu0 %v708
      %v737 = vpop.xlane.xlu0 %736
      %738 = vmax.xlane.f32.xlu0 %v709
      %v739 = vpop.xlane.xlu0 %738
      %740 = vmax.xlane.f32.xlu0 %v710
      %v741 = vpop.xlane.xlu0 %740
      %742 = vmax.xlane.f32.xlu0 %v711
      %v743 = vpop.xlane.xlu0 %742
      %v744 = vsub.f32 %v696, %v713
      %v745 = vsub.f32 %v697, %v715
      %v746 = vsub.f32 %v698, %v717
      %v747 = vsub.f32 %v699, %v719
      %v748 = vsub.f32 %v700, %v721
      %v749 = vsub.f32 %v701, %v723
      %v750 = vsub.f32 %v702, %v725
      %v751 = vsub.f32 %v703, %v727
      %v752 = vsub.f32 %v704, %v729
      %v753 = vsub.f32 %v705, %v731
      %v754 = vsub.f32 %v706, %v733
      %v755 = vsub.f32 %v707, %v735
      %v756 = vsub.f32 %v708, %v737
      %v757 = vsub.f32 %v709, %v739
      %v758 = vsub.f32 %v710, %v741
      %v759 = vsub.f32 %v711, %v743
      %v760 = vmul.f32 %v744, 1.442695
      %v761 = vpow.pop %v760
      %v762 = vmul.f32 %v745, 1.442695
      %v763 = vpow.pop %v762
      %v764 = vmul.f32 %v746, 1.442695
      %v765 = vpow.pop %v764
      %v766 = vmul.f32 %v747, 1.442695
      %v767 = vpow.pop %v766
      %v768 = vmul.f32 %v748, 1.442695
      %v769 = vpow.pop %v768
      %v770 = vmul.f32 %v749, 1.442695
      %v771 = vpow.pop %v770
      %v772 = vmul.f32 %v750, 1.442695
      %v773 = vpow.pop %v772
      %v774 = vmul.f32 %v751, 1.442695
      %v775 = vpow.pop %v774
      %v776 = vmul.f32 %v752, 1.442695
      %v777 = vpow.pop %v776
      %v778 = vmul.f32 %v753, 1.442695
      %v779 = vpow.pop %v778
      %v780 = vmul.f32 %v754, 1.442695
      %v781 = vpow.pop %v780
      %v782 = vmul.f32 %v755, 1.442695
      %v783 = vpow.pop %v782
      %v784 = vmul.f32 %v756, 1.442695
      %v785 = vpow.pop %v784
      %v786 = vmul.f32 %v757, 1.442695
      %v787 = vpow.pop %v786
      %v788 = vmul.f32 %v758, 1.442695
      %v789 = vpow.pop %v788
      %v790 = vmul.f32 %v759, 1.442695
      %v791 = vpow.pop %v790
      %792 = vadd.xlane.f32.xlu0 %v761
      %v793 = vpop.xlane.xlu0 %792
      %794 = vadd.xlane.f32.xlu0 %v763
      %v795 = vpop.xlane.xlu0 %794
      %796 = vadd.xlane.f32.xlu0 %v765
      %v797 = vpop.xlane.xlu0 %796
      %798 = vadd.xlane.f32.xlu0 %v767
      %v799 = vpop.xlane.xlu0 %798
      %800 = vadd.xlane.f32.xlu0 %v769
      %v801 = vpop.xlane.xlu0 %800
      %802 = vadd.xlane.f32.xlu0 %v771
      %v803 = vpop.xlane.xlu0 %802
      %804 = vadd.xlane.f32.xlu0 %v773
      %v805 = vpop.xlane.xlu0 %804
      %806 = vadd.xlane.f32.xlu0 %v775
      %v807 = vpop.xlane.xlu0 %806
      %808 = vadd.xlane.f32.xlu0 %v777
      %v809 = vpop.xlane.xlu0 %808
      %810 = vadd.xlane.f32.xlu0 %v779
      %v811 = vpop.xlane.xlu0 %810
      %812 = vadd.xlane.f32.xlu0 %v781
      %v813 = vpop.xlane.xlu0 %812
      %814 = vadd.xlane.f32.xlu0 %v783
      %v815 = vpop.xlane.xlu0 %814
      %816 = vadd.xlane.f32.xlu0 %v785
      %v817 = vpop.xlane.xlu0 %816
      %818 = vadd.xlane.f32.xlu0 %v787
      %v819 = vpop.xlane.xlu0 %818
      %820 = vadd.xlane.f32.xlu0 %v789
      %v821 = vpop.xlane.xlu0 %820
      %822 = vadd.xlane.f32.xlu0 %v791
      %v823 = vpop.xlane.xlu0 %822
      %v824 = vlog2.pop %v793
      %v825 = vmul.f32 %v824, 0.6931472
      %v826 = vlog2.pop %v795
      %v827 = vmul.f32 %v826, 0.6931472
      %v828 = vlog2.pop %v797
      %v829 = vmul.f32 %v828, 0.6931472
      %v830 = vlog2.pop %v799
      %v831 = vmul.f32 %v830, 0.6931472
      %v832 = vlog2.pop %v801
      %v833 = vmul.f32 %v832, 0.6931472
      %v834 = vlog2.pop %v803
      %v835 = vmul.f32 %v834, 0.6931472
      %v836 = vlog2.pop %v805
      %v837 = vmul.f32 %v836, 0.6931472
      %v838 = vlog2.pop %v807
      %v839 = vmul.f32 %v838, 0.6931472
      %v840 = vlog2.pop %v809
      %v841 = vmul.f32 %v840, 0.6931472
      %v842 = vlog2.pop %v811
      %v843 = vmul.f32 %v842, 0.6931472
      %v844 = vlog2.pop %v813
      %v845 = vmul.f32 %v844, 0.6931472
      %v846 = vlog2.pop %v815
      %v847 = vmul.f32 %v846, 0.6931472
      %v848 = vlog2.pop %v817
      %v849 = vmul.f32 %v848, 0.6931472
      %v850 = vlog2.pop %v819
      %v851 = vmul.f32 %v850, 0.6931472
      %v852 = vlog2.pop %v821
      %v853 = vmul.f32 %v852, 0.6931472
      %v854 = vlog2.pop %v823
      %v855 = vmul.f32 %v854, 0.6931472
      %v856 = vsub.f32 %v744, %v825
      %v857 = vsub.f32 %v745, %v827
      %v858 = vsub.f32 %v746, %v829
      %v859 = vsub.f32 %v747, %v831
      %v860 = vsub.f32 %v748, %v833
      %v861 = vsub.f32 %v749, %v835
      %v862 = vsub.f32 %v750, %v837
      %v863 = vsub.f32 %v751, %v839
      %v864 = vsub.f32 %v752, %v841
      %v865 = vsub.f32 %v753, %v843
      %v866 = vsub.f32 %v754, %v845
      %v867 = vsub.f32 %v755, %v847
      %v868 = vsub.f32 %v756, %v849
      %v869 = vsub.f32 %v757, %v851
      %v870 = vsub.f32 %v758, %v853
      %v871 = vsub.f32 %v759, %v855
      %872 = vst [vmem:[%s4] sm:$0xff] %v856
      %873 = vst [vmem:[%s4 + $0x8] sm:$0xff] %v857
      %874 = vst [vmem:[%s4 + $0x10] sm:$0xff] %v858
      %875 = vst [vmem:[%s4 + $0x18] sm:$0xff] %v859
      %876 = vst [vmem:[%s4 + $0x20] sm:$0xff] %v860
      %877 = vst [vmem:[%s4 + $0x28] sm:$0xff] %v861
      %878 = vst [vmem:[%s4 + $0x30] sm:$0xff] %v862
      %879 = vst [vmem:[%s4 + $0x38] sm:$0xff] %v863
      %880 = vst [vmem:[%s4 + $0x40] sm:$0xff] %v864
      %881 = vst [vmem:[%s4 + $0x48] sm:$0xff] %v865
      %882 = vst [vmem:[%s4 + $0x50] sm:$0xff] %v866
      %883 = vst [vmem:[%s4 + $0x58] sm:$0xff] %v867
      %884 = vst [vmem:[%s4 + $0x60] sm:$0xff] %v868
      %885 = vst [vmem:[%s4 + $0x68] sm:$0xff] %v869
      %886 = vst [vmem:[%s4 + $0x70] sm:$0xff] %v870
      %887 = vst [vmem:[%s4 + $0x78] sm:$0xff] %v871
    $region107: #{graphsage_forward.7} parent=1 // pred_fallthru
      _
    // Predicated region
    $region108: #{graphsage_forward.7} parent=1 // pred_check
      _
    $region109: #{graphsage_forward.7} parent=1 // pred_check_branch
      %889 = sbr.rel (0) target = $region111
    $region110: #{graphsage_forward.7} parent=1 // pred_region
      _
    $region111: #{graphsage_forward.7} parent=1 // pred_fallthru
      _
    // Predicated region
    $region112: #{graphsage_forward.7} parent=1 // pred_check
      _
    $region113: #{graphsage_forward.7} parent=1 // pred_check_branch
      %891 = sbr.rel (0) target = $region115
    $region114: #{graphsage_forward.7} parent=1 // pred_region
      _
    $region115: #{graphsage_forward.7} parent=1 // pred_fallthru
      _

</llo_original>
